<compile_context>
chip_gen: v7x
topology: tpu7x:2x2x1
jax: 0.10.0
libtpu: 0.0.40
codegen_flags: <defaults>
</compile_context>

<pallas_src>
import functools

import jax
import jax.numpy as jnp
import numpy as np
from jax.experimental import pallas as pl
from jax.experimental.pallas import tpu as pltpu


# ---------------------------------------------------------------------------
# Kernels
# ---------------------------------------------------------------------------
def _make_s2d_conv_kernel(offsets, m):
    """2x2 stride-1 conv (a space-to-depth'ed 4x4/s2 conv) + bias + ReLU.

    x_ref : (1, Cs, Lg)   bf16  channel-major flattened input (+1 guard col)
    w_ref : (Cout, 4*Cs)  bf16  strip weight (tap-major, then channel)
    b_ref : (Cout, 1)     f32
    o_ref : (1, Cout, M)  bf16  wide rows, M = Ho*Win (garbage cols kept)
    """
    def kernel(x_ref, w_ref, b_ref, o_ref):
        # im2col strip (K, M): one lane-shifted slice per tap, built once.
        strip = jnp.concatenate(
            [x_ref[0, :, off:off + m] for off in offsets], axis=0)
        acc = jnp.dot(w_ref[...], strip, preferred_element_type=jnp.float32)
        acc = jnp.maximum(acc + b_ref[...], 0.0)
        o_ref[0, :, :] = acc.astype(o_ref.dtype)
    return kernel


def _make_tail_kernel(n_res_block, wp, w4, h4):
    """Fused tail: conv2 (3x3 same) -> n ResBlocks -> ReLU -> 1x1 conv_out.

    The running activation lives in a zero-halo padded VMEM buffer
    (C, (H4+2)*Wp + 2 guard).  Each 3x3 conv is one K = 9*C matmul over an
    im2col strip; its wide-row garbage columns are masked to zero before the
    write-back at flat offset Wp+1, which keeps the halo exactly zero.
    """
    m = h4 * wp                       # wide-row output length
    start = wp + 1                    # flat offset of true (0, 0) in the pad
    offsets = tuple(i * wp + j for i in range(3) for j in range(3))

    def kernel(*refs):
        x_ref = refs[0]
        wc2_ref, bc2_ref = refs[1], refs[2]
        res_refs = refs[3:3 + 4 * n_res_block]
        wo_ref = refs[3 + 4 * n_res_block]
        bo_ref = refs[4 + 4 * n_res_block]
        o_ref = refs[5 + 4 * n_res_block]
        act_ref = refs[6 + 4 * n_res_block]           # VMEM scratch (C, Lg) f32

        col = jax.lax.broadcasted_iota(jnp.int32, (1, m), 1)
        valid = (col % wp) < w4                        # mask for garbage cols

        # ---- conv2 : 3x3 "same" conv on the padded bf16 input --------------
        strip = jnp.concatenate(
            [x_ref[0, :, off:off + m] for off in offsets], axis=0)
        h = jnp.dot(wc2_ref[...], strip, preferred_element_type=jnp.float32)
        h = jnp.where(valid, h + bc2_ref[...], 0.0)
        act_ref[...] = jnp.zeros(act_ref.shape, act_ref.dtype)
        act_ref[:, start:start + m] = h

        # ---- ResBlocks: ReLU -> 3x3 -> ReLU -> 1x1 -> + residual -----------
        for r in range(n_res_block):
            w1_ref, b1_ref, w2_ref, b2_ref = res_refs[4 * r:4 * r + 4]
            a_bf = jnp.maximum(act_ref[...], 0.0).astype(jnp.bfloat16)  # hoisted
            strip = jnp.concatenate(
                [a_bf[:, off:off + m] for off in offsets], axis=0)
            t1 = jnp.dot(w1_ref[...], strip, preferred_element_type=jnp.float32)
            t1 = jnp.maximum(t1 + b1_ref[...], 0.0).astype(jnp.bfloat16)
            t2 = jnp.dot(w2_ref[...], t1, preferred_element_type=jnp.float32)
            y = t2 + b2_ref[...] + act_ref[:, start:start + m]   # f32 residual
            act_ref[:, start:start + m] = jnp.where(valid, y, 0.0)

        # ---- final ReLU + 1x1 conv_out --------------------------------------
        z = jnp.maximum(act_ref[:, start:start + m], 0.0).astype(jnp.bfloat16)
        out = jnp.dot(wo_ref[...], z, preferred_element_type=jnp.float32)
        o_ref[0, :, :] = (out + bo_ref[...]).astype(o_ref.dtype)
    return kernel


# ---------------------------------------------------------------------------
# pallas_call wrappers
# ---------------------------------------------------------------------------
def _conv_s2d_pallas(x_s2d, w_strip, b_col):
    """2x2/s1 'valid' conv (+bias+ReLU) over a space-to-depth'ed input.

    x_s2d: (N, Cs, Hs, Ws) bf16  ->  (N, Cout, Ho, Wo) bf16 (channel-major).
    """
    n, cs, hs, ws = x_s2d.shape
    cout, k = w_strip.shape
    assert k == 4 * cs
    ho, wo = hs - 1, ws - 1
    m = ho * ws                                      # wide rows
    xf = x_s2d.reshape(n, cs, hs * ws)
    xf = jnp.pad(xf, ((0, 0), (0, 0), (0, 1)))       # KW-1 = 1 guard column
    lg = xf.shape[-1]
    offsets = (0, 1, ws, ws + 1)                     # taps (0,0)(0,1)(1,0)(1,1)

    out = pl.pallas_call(
        _make_s2d_conv_kernel(offsets, m),
        out_shape=jax.ShapeDtypeStruct((n, cout, m), jnp.bfloat16),
        grid=(n,),
        in_specs=[
            pl.BlockSpec((1, cs, lg), lambda i: (i, 0, 0)),
            pl.BlockSpec((cout, k), lambda i: (0, 0)),
            pl.BlockSpec((cout, 1), lambda i: (0, 0)),
        ],
        out_specs=pl.BlockSpec((1, cout, m), lambda i: (i, 0, 0)),
        compiler_params=pltpu.CompilerParams(
            dimension_semantics=("parallel",)),
    )(xf, w_strip, b_col)
    return out.reshape(n, cout, ho, ws)[:, :, :, :wo]


def _tail_pallas(x, wc2, bc2, res_params, wo, bo):
    """Fused conv2 + ResBlocks + ReLU + conv_out.

    x: (N, C, H4, W4) bf16 (post-ReLU conv1 output).  Returns NHWC f32.
    """
    n, c, h4, w4 = x.shape
    hp, wp = h4 + 2, w4 + 2
    lp = hp * wp
    m = h4 * wp
    n_res = len(res_params) // 4
    e = wo.shape[0]

    xp = jnp.pad(x, ((0, 0), (0, 0), (1, 1), (1, 1))).reshape(n, c, lp)
    xp = jnp.pad(xp, ((0, 0), (0, 0), (0, 2)))       # KW-1 = 2 guard columns
    lg = lp + 2

    in_specs = [pl.BlockSpec((1, c, lg), lambda i: (i, 0, 0)),
                pl.BlockSpec(wc2.shape, lambda i: (0, 0)),
                pl.BlockSpec(bc2.shape, lambda i: (0, 0))]
    for arr in res_params:
        in_specs.append(pl.BlockSpec(arr.shape, lambda i: (0, 0)))
    in_specs += [pl.BlockSpec(wo.shape, lambda i: (0, 0)),
                 pl.BlockSpec(bo.shape, lambda i: (0, 0))]

    out = pl.pallas_call(
        _make_tail_kernel(n_res, wp, w4, h4),
        out_shape=jax.ShapeDtypeStruct((n, e, m), jnp.float32),
        grid=(n,),
        in_specs=in_specs,
        out_specs=pl.BlockSpec((1, e, m), lambda i: (i, 0, 0)),
        scratch_shapes=[pltpu.VMEM((c, lg), jnp.float32)],
        compiler_params=pltpu.CompilerParams(
            dimension_semantics=("parallel",)),
    )(xp, wc2, bc2, *res_params, wo, bo)

    out = out.reshape(n, e, h4, wp)[:, :, :, :w4]
    return jnp.transpose(out, (0, 2, 3, 1))          # == .permute(0, 2, 3, 1)


def _space_to_depth_pad1_nchw(x):
    """Zero-pad by 1 + space-to-depth(2) in NCHW: a 4x4/stride-2/pad-1 conv
    becomes a 2x2/stride-1 valid conv over this tensor.  Channel index of the
    result is ci*4 + rp*2 + cp (matches _s2d_strip_weights)."""
    n, c, h, w = x.shape
    assert h % 2 == 0 and w % 2 == 0
    xp = jnp.pad(x, ((0, 0), (0, 0), (1, 1), (1, 1)))
    hp, wp = h + 2, w + 2
    xs = xp.reshape(n, c, hp // 2, 2, wp // 2, 2)     # (n, c, dh, rp, dw, cp)
    xs = jnp.transpose(xs, (0, 1, 3, 5, 2, 4))        # (n, c, rp, cp, dh, dw)
    return xs.reshape(n, c * 4, hp // 2, wp // 2)


# ---------------------------------------------------------------------------
# Parameters (PyTorch OIHW layout) + one-time kernel-ready re-arrangement
# ---------------------------------------------------------------------------
def _init_conv(key, cout, cin, kh, kw):
    kw_, kb_ = jax.random.split(key)
    fan_in = cin * kh * kw
    bound = 1.0 / np.sqrt(fan_in)
    w = jax.random.uniform(kw_, (cout, cin, kh, kw), jnp.float32, -bound, bound)
    b = jax.random.uniform(kb_, (cout,), jnp.float32, -bound, bound)
    return w, b


def make_encoder_params(key, in_channel, channel, n_res_block, n_res_channel,
                        embed_dim):
    # stride == 4 block structure of the PyTorch Encoder
    keys = jax.random.split(key, 4 + 2 * n_res_block)
    p = {}
    p["conv0"] = _init_conv(keys[0], channel // 2, in_channel, 4, 4)
    p["conv1"] = _init_conv(keys[1], channel, channel // 2, 4, 4)
    p["conv2"] = _init_conv(keys[2], channel, channel, 3, 3)
    for r in range(n_res_block):
        p[f"res{r}_conv1"] = _init_conv(keys[3 + 2 * r], n_res_channel, channel, 3, 3)
        p[f"res{r}_conv2"] = _init_conv(keys[4 + 2 * r], channel, n_res_channel, 1, 1)
    p["conv_out"] = _init_conv(keys[3 + 2 * n_res_block], embed_dim, channel, 1, 1)
    return p


def _strip_weights(w_oihw):
    """(Cout, Cin, KH, KW) -> (Cout, KH*KW*Cin) bf16, tap-major then channel."""
    cout, cin, kh, kw = w_oihw.shape
    w = jnp.transpose(w_oihw, (0, 2, 3, 1)).reshape(cout, kh * kw * cin)
    return w.astype(jnp.bfloat16)


def _s2d_strip_weights(w_oihw):
    """4x4 stride-2 weights -> strip weights of the equivalent 2x2 stride-1
    conv over the space-to-depth input (channel index ci*4 + rp*2 + cp)."""
    cout, cin, kh, kw = w_oihw.shape
    assert kh == 4 and kw == 4
    w = w_oihw.reshape(cout, cin, 2, 2, 2, 2)         # (co, ci, dkh, rp, dkw, cp)
    w = jnp.transpose(w, (0, 1, 3, 5, 2, 4))          # (co, ci, rp, cp, dkh, dkw)
    w = w.reshape(cout, cin * 4, 2, 2)
    return _strip_weights(w)


def _bias_col(b):
    return b.reshape(-1, 1).astype(jnp.float32)


def prepare_kernel_params(params, n_res_block):
    """One-time weight re-layout (call outside the forward / training step)."""
    kp = {}
    w, b = params["conv0"]; kp["conv0"] = (_s2d_strip_weights(w), _bias_col(b))
    w, b = params["conv1"]; kp["conv1"] = (_s2d_strip_weights(w), _bias_col(b))
    w, b = params["conv2"]; kp["conv2"] = (_strip_weights(w), _bias_col(b))
    res = []
    for r in range(n_res_block):
        w1, b1 = params[f"res{r}_conv1"]
        w2, b2 = params[f"res{r}_conv2"]
        res += [_strip_weights(w1), _bias_col(b1),
                _strip_weights(w2), _bias_col(b2)]
    kp["res"] = tuple(res)
    w, b = params["conv_out"]
    kp["conv_out"] = (_strip_weights(w), _bias_col(b))
    return kp


# ---------------------------------------------------------------------------
# Encoder forward (stride=4): Conv/ReLU stack -> ResBlocks -> ReLU -> 1x1 Conv
# ---------------------------------------------------------------------------
def encoder_forward(x_nchw, kp):
    x = x_nchw.astype(jnp.bfloat16)                   # matmul operands are bf16
    w, b = kp["conv0"]
    x = _conv_s2d_pallas(_space_to_depth_pad1_nchw(x), w, b)
    w, b = kp["conv1"]
    x = _conv_s2d_pallas(_space_to_depth_pad1_nchw(x), w, b)
    wc2, bc2 = kp["conv2"]
    wo, bo = kp["conv_out"]
    # conv2 + all ResBlocks + final ReLU + conv_out in a single pallas_call.
    return _tail_pallas(x, wc2, bc2, kp["res"], wo, bo)   # NHWC, f32


# ---------------------------------------------------------------------------
# Pure-JAX reference (lax.conv, mirroring the kernel's bf16 matmul operands)
# ---------------------------------------------------------------------------
def _q(x):
    return x.astype(jnp.bfloat16).astype(jnp.float32)


def _conv_ref(x, w_oihw, b, stride, padding):
    y = jax.lax.conv_general_dilated(
        _q(x), jnp.transpose(_q(w_oihw), (2, 3, 1, 0)),
        window_strides=(stride, stride),
        padding=[(padding, padding), (padding, padding)],
        dimension_numbers=("NHWC", "HWIO", "NHWC"),
        precision=jax.lax.Precision.HIGHEST)
    return y + b


def encoder_forward_ref(x_nchw, params, n_res_block):
    x = jnp.transpose(x_nchw, (0, 2, 3, 1))
    w, b = params["conv0"]; x = jax.nn.relu(_conv_ref(x, w, b, 2, 1))
    w, b = params["conv1"]; x = jax.nn.relu(_conv_ref(x, w, b, 2, 1))
    w, b = params["conv2"]; x = _conv_ref(x, w, b, 1, 1)
    for r in range(n_res_block):
        w1, b1 = params[f"res{r}_conv1"]
        w2, b2 = params[f"res{r}_conv2"]
        h = jax.nn.relu(_conv_ref(jax.nn.relu(x), w1, b1, 1, 1))
        x = _conv_ref(h, w2, b2, 1, 0) + x
    w, b = params["conv_out"]
    return _conv_ref(jax.nn.relu(x), w, b, 1, 0)


if __name__ == "__main__":
    # Small config consistent with Encoder(in_channel, channel, n_res_block,
    # n_res_channel, stride=4, embed_dim, n_embed, simple)
    in_channel, channel = 4, 32
    n_res_block, n_res_channel = 2, 16
    embed_dim = 8

    key = jax.random.PRNGKey(0)
    k_x, k_p = jax.random.split(key)
    x = jax.random.normal(k_x, (2, in_channel, 16, 16), jnp.float32)  # NCHW
    params = make_encoder_params(k_p, in_channel, channel, n_res_block,
                                 n_res_channel, embed_dim)
    kp = prepare_kernel_params(params, n_res_block)   # hoisted, runs once

    fwd = jax.jit(encoder_forward)
    out = jax.block_until_ready(fwd(x, kp))

    ref = jax.block_until_ready(encoder_forward_ref(x, params, n_res_block))
    assert out.shape == (2, 4, 4, embed_dim), out.shape
    err = float(np.max(np.abs(np.asarray(out) - np.asarray(ref))))
    assert np.allclose(np.asarray(out), np.asarray(ref), rtol=2e-3, atol=2e-3), err

    print("KERNEL_OK")
</pallas_src>

<mosaic_0001>
module attributes {stable_mosaic.version = 11 : i64} {
  func.func @kernel(%arg0: i32, %arg1: memref<1x16x82xbf16, #tpu.memory_space<vmem>>, %arg2: memref<16x64xbf16, #tpu.memory_space<vmem>>, %arg3: memref<16x1xf32, #tpu.memory_space<vmem>>, %arg4: memref<1x16x72xbf16, #tpu.memory_space<vmem>>) attributes {dimension_semantics = [#tpu.dimension_semantics<parallel>], iteration_bounds = array<i64: 2>, scalar_prefetch = 0 : i64, scratch_operands = 0 : i64, tpu.core_type = #tpu.core_type<tc>, window_params = [{transform_indices = @transform_0, window_bounds = array<i64: 1, 16, 82>}, {pipeline_mode = #tpu.pipeline_mode<synchronous>, transform_indices = @transform_1, window_bounds = array<i64: 16, 64>}, {pipeline_mode = #tpu.pipeline_mode<synchronous>, transform_indices = @transform_2, window_bounds = array<i64: 16, 1>}, {transform_indices = @transform_3, window_bounds = array<i64: 1, 16, 72>}]} {
    %c0 = arith.constant 0 : index
    %c0_0 = arith.constant 0 : index
    %c0_1 = arith.constant 0 : index
    %0 = vector.load %arg1[%c0, %c0_0, %c0_1] : memref<1x16x82xbf16, #tpu.memory_space<vmem>>, vector<1x16x72xbf16>
    %1 = vector.shape_cast %0 : vector<1x16x72xbf16> to vector<16x72xbf16>
    %c0_2 = arith.constant 0 : index
    %c0_3 = arith.constant 0 : index
    %c1 = arith.constant 1 : index
    %2 = vector.load %arg1[%c0_2, %c0_3, %c1] : memref<1x16x82xbf16, #tpu.memory_space<vmem>>, vector<1x16x72xbf16>
    %3 = vector.shape_cast %2 : vector<1x16x72xbf16> to vector<16x72xbf16>
    %c0_4 = arith.constant 0 : index
    %c0_5 = arith.constant 0 : index
    %c9 = arith.constant 9 : index
    %4 = vector.load %arg1[%c0_4, %c0_5, %c9] : memref<1x16x82xbf16, #tpu.memory_space<vmem>>, vector<1x16x72xbf16>
    %5 = vector.shape_cast %4 : vector<1x16x72xbf16> to vector<16x72xbf16>
    %c0_6 = arith.constant 0 : index
    %c0_7 = arith.constant 0 : index
    %c10 = arith.constant 10 : index
    %6 = vector.load %arg1[%c0_6, %c0_7, %c10] : memref<1x16x82xbf16, #tpu.memory_space<vmem>>, vector<1x16x72xbf16>
    %7 = vector.shape_cast %6 : vector<1x16x72xbf16> to vector<16x72xbf16>
    %8 = tpu.concatenate %1, %3, %5, %7 in 0 : vector<16x72xbf16>, vector<16x72xbf16>, vector<16x72xbf16>, vector<16x72xbf16> -> vector<64x72xbf16>
    %c0_8 = arith.constant 0 : index
    %c0_9 = arith.constant 0 : index
    %9 = vector.load %arg2[%c0_8, %c0_9] : memref<16x64xbf16, #tpu.memory_space<vmem>>, vector<16x64xbf16>
    %cst = arith.constant dense<0.000000e+00> : vector<16x72xf32>
    %10 = tpu.matmul %9, %8, %cst {dimension_numbers = #tpu.dot_dimension_numbers<[1], [0], [0], [1], [0, 0, 1, 1], [], []>} : vector<16x64xbf16>, vector<64x72xbf16>, vector<16x72xf32> -> vector<16x72xf32>
    %c0_10 = arith.constant 0 : index
    %c0_11 = arith.constant 0 : index
    %11 = vector.load %arg3[%c0_10, %c0_11] : memref<16x1xf32, #tpu.memory_space<vmem>>, vector<16x1xf32>
    %12 = vector.broadcast %11 : vector<16x1xf32> to vector<16x72xf32>
    %13 = arith.addf %10, %12 : vector<16x72xf32>
    %cst_12 = arith.constant 0.000000e+00 : f32
    %14 = vector.broadcast %cst_12 : f32 to vector<16x72xf32>
    %15 = arith.maximumf %13, %14 : vector<16x72xf32>
    %16 = arith.truncf %15 : vector<16x72xf32> to vector<16x72xbf16>
    %c0_13 = arith.constant 0 : index
    %c0_14 = arith.constant 0 : index
    %c0_15 = arith.constant 0 : index
    %17 = vector.load %arg4[%c0_13, %c0_14, %c0_15] : memref<1x16x72xbf16, #tpu.memory_space<vmem>>, vector<1x16x72xbf16>
    %18 = vector.shape_cast %17 : vector<1x16x72xbf16> to vector<16x72xbf16>
    %19 = vector.shape_cast %16 : vector<16x72xbf16> to vector<1x16x72xbf16>
    tpu.vector_store %arg4[%c0_13, %c0_14, %c0_15], %19 {strides = array<i32>} : memref<1x16x72xbf16, #tpu.memory_space<vmem>>, vector<1x16x72xbf16>,
    return
  }
  func.func @transform_0(%arg0: i32) -> (i32, i32, i32) {
    %c0_i32 = arith.constant 0 : i32
    %c0_i32_0 = arith.constant 0 : i32
    %c0_i32_1 = arith.constant 0 : i32
    return %arg0, %c0_i32, %c0_i32_0 : i32, i32, i32
  }
  func.func @transform_1(%arg0: i32) -> (i32, i32) {
    %c0_i32 = arith.constant 0 : i32
    %c0_i32_0 = arith.constant 0 : i32
    %c0_i32_1 = arith.constant 0 : i32
    return %c0_i32, %c0_i32_0 : i32, i32
  }
  func.func @transform_2(%arg0: i32) -> (i32, i32) {
    %c0_i32 = arith.constant 0 : i32
    %c0_i32_0 = arith.constant 0 : i32
    %c0_i32_1 = arith.constant 0 : i32
    return %c0_i32, %c0_i32_0 : i32, i32
  }
  func.func @transform_3(%arg0: i32) -> (i32, i32, i32) {
    %c0_i32 = arith.constant 0 : i32
    %c0_i32_0 = arith.constant 0 : i32
    %c0_i32_1 = arith.constant 0 : i32
    return %arg0, %c0_i32, %c0_i32_0 : i32, i32, i32
  }
}

module attributes {stable_mosaic.version = 11 : i64} {
  func.func @kernel(%arg0: i32, %arg1: memref<1x64x26xbf16, #tpu.memory_space<vmem>>, %arg2: memref<32x256xbf16, #tpu.memory_space<vmem>>, %arg3: memref<32x1xf32, #tpu.memory_space<vmem>>, %arg4: memref<1x32x20xbf16, #tpu.memory_space<vmem>>) attributes {dimension_semantics = [#tpu.dimension_semantics<parallel>], iteration_bounds = array<i64: 2>, scalar_prefetch = 0 : i64, scratch_operands = 0 : i64, tpu.core_type = #tpu.core_type<tc>, window_params = [{transform_indices = @transform_0, window_bounds = array<i64: 1, 64, 26>}, {pipeline_mode = #tpu.pipeline_mode<synchronous>, transform_indices = @transform_1, window_bounds = array<i64: 32, 256>}, {pipeline_mode = #tpu.pipeline_mode<synchronous>, transform_indices = @transform_2, window_bounds = array<i64: 32, 1>}, {transform_indices = @transform_3, window_bounds = array<i64: 1, 32, 20>}]} {
    %c0 = arith.constant 0 : index
    %c0_0 = arith.constant 0 : index
    %c0_1 = arith.constant 0 : index
    %0 = vector.load %arg1[%c0, %c0_0, %c0_1] : memref<1x64x26xbf16, #tpu.memory_space<vmem>>, vector<1x64x20xbf16>
    %1 = vector.shape_cast %0 : vector<1x64x20xbf16> to vector<64x20xbf16>
    %c0_2 = arith.constant 0 : index
    %c0_3 = arith.constant 0 : index
    %c1 = arith.constant 1 : index
    %2 = vector.load %arg1[%c0_2, %c0_3, %c1] : memref<1x64x26xbf16, #tpu.memory_space<vmem>>, vector<1x64x20xbf16>
    %3 = vector.shape_cast %2 : vector<1x64x20xbf16> to vector<64x20xbf16>
    %c0_4 = arith.constant 0 : index
    %c0_5 = arith.constant 0 : index
    %c5 = arith.constant 5 : index
    %4 = vector.load %arg1[%c0_4, %c0_5, %c5] : memref<1x64x26xbf16, #tpu.memory_space<vmem>>, vector<1x64x20xbf16>
    %5 = vector.shape_cast %4 : vector<1x64x20xbf16> to vector<64x20xbf16>
    %c0_6 = arith.constant 0 : index
    %c0_7 = arith.constant 0 : index
    %c6 = arith.constant 6 : index
    %6 = vector.load %arg1[%c0_6, %c0_7, %c6] : memref<1x64x26xbf16, #tpu.memory_space<vmem>>, vector<1x64x20xbf16>
    %7 = vector.shape_cast %6 : vector<1x64x20xbf16> to vector<64x20xbf16>
    %8 = tpu.concatenate %1, %3, %5, %7 in 0 : vector<64x20xbf16>, vector<64x20xbf16>, vector<64x20xbf16>, vector<64x20xbf16> -> vector<256x20xbf16>
    %c0_8 = arith.constant 0 : index
    %c0_9 = arith.constant 0 : index
    %9 = vector.load %arg2[%c0_8, %c0_9] : memref<32x256xbf16, #tpu.memory_space<vmem>>, vector<32x256xbf16>
    %cst = arith.constant dense<0.000000e+00> : vector<32x20xf32>
    %10 = tpu.matmul %9, %8, %cst {dimension_numbers = #tpu.dot_dimension_numbers<[1], [0], [0], [1], [0, 0, 1, 1], [], []>} : vector<32x256xbf16>, vector<256x20xbf16>, vector<32x20xf32> -> vector<32x20xf32>
    %c0_10 = arith.constant 0 : index
    %c0_11 = arith.constant 0 : index
    %11 = vector.load %arg3[%c0_10, %c0_11] : memref<32x1xf32, #tpu.memory_space<vmem>>, vector<32x1xf32>
    %12 = vector.broadcast %11 : vector<32x1xf32> to vector<32x20xf32>
    %13 = arith.addf %10, %12 : vector<32x20xf32>
    %cst_12 = arith.constant 0.000000e+00 : f32
    %14 = vector.broadcast %cst_12 : f32 to vector<32x20xf32>
    %15 = arith.maximumf %13, %14 : vector<32x20xf32>
    %16 = arith.truncf %15 : vector<32x20xf32> to vector<32x20xbf16>
    %c0_13 = arith.constant 0 : index
    %c0_14 = arith.constant 0 : index
    %c0_15 = arith.constant 0 : index
    %17 = vector.load %arg4[%c0_13, %c0_14, %c0_15] : memref<1x32x20xbf16, #tpu.memory_space<vmem>>, vector<1x32x20xbf16>
    %18 = vector.shape_cast %17 : vector<1x32x20xbf16> to vector<32x20xbf16>
    %19 = vector.shape_cast %16 : vector<32x20xbf16> to vector<1x32x20xbf16>
    tpu.vector_store %arg4[%c0_13, %c0_14, %c0_15], %19 {strides = array<i32>} : memref<1x32x20xbf16, #tpu.memory_space<vmem>>, vector<1x32x20xbf16>,
    return
  }
  func.func @transform_0(%arg0: i32) -> (i32, i32, i32) {
    %c0_i32 = arith.constant 0 : i32
    %c0_i32_0 = arith.constant 0 : i32
    %c0_i32_1 = arith.constant 0 : i32
    return %arg0, %c0_i32, %c0_i32_0 : i32, i32, i32
  }
  func.func @transform_1(%arg0: i32) -> (i32, i32) {
    %c0_i32 = arith.constant 0 : i32
    %c0_i32_0 = arith.constant 0 : i32
    %c0_i32_1 = arith.constant 0 : i32
    return %c0_i32, %c0_i32_0 : i32, i32
  }
  func.func @transform_2(%arg0: i32) -> (i32, i32) {
    %c0_i32 = arith.constant 0 : i32
    %c0_i32_0 = arith.constant 0 : i32
    %c0_i32_1 = arith.constant 0 : i32
    return %c0_i32, %c0_i32_0 : i32, i32
  }
  func.func @transform_3(%arg0: i32) -> (i32, i32, i32) {
    %c0_i32 = arith.constant 0 : i32
    %c0_i32_0 = arith.constant 0 : i32
    %c0_i32_1 = arith.constant 0 : i32
    return %arg0, %c0_i32, %c0_i32_0 : i32, i32, i32
  }
}

module attributes {stable_mosaic.version = 11 : i64} {
  func.func @kernel(%arg0: i32, %arg1: memref<1x32x38xbf16, #tpu.memory_space<vmem>>, %arg2: memref<32x288xbf16, #tpu.memory_space<vmem>>, %arg3: memref<32x1xf32, #tpu.memory_space<vmem>>, %arg4: memref<16x288xbf16, #tpu.memory_space<vmem>>, %arg5: memref<16x1xf32, #tpu.memory_space<vmem>>, %arg6: memref<32x16xbf16, #tpu.memory_space<vmem>>, %arg7: memref<32x1xf32, #tpu.memory_space<vmem>>, %arg8: memref<16x288xbf16, #tpu.memory_space<vmem>>, %arg9: memref<16x1xf32, #tpu.memory_space<vmem>>, %arg10: memref<32x16xbf16, #tpu.memory_space<vmem>>, %arg11: memref<32x1xf32, #tpu.memory_space<vmem>>, %arg12: memref<8x32xbf16, #tpu.memory_space<vmem>>, %arg13: memref<8x1xf32, #tpu.memory_space<vmem>>, %arg14: memref<1x8x24xf32, #tpu.memory_space<vmem>>, %arg15: memref<32x38xf32, #tpu.memory_space<vmem>>) attributes {dimension_semantics = [#tpu.dimension_semantics<parallel>], iteration_bounds = array<i64: 2>, scalar_prefetch = 0 : i64, scratch_operands = 1 : i64, tpu.core_type = #tpu.core_type<tc>, window_params = [{transform_indices = @transform_0, window_bounds = array<i64: 1, 32, 38>}, {pipeline_mode = #tpu.pipeline_mode<synchronous>, transform_indices = @transform_1, window_bounds = array<i64: 32, 288>}, {pipeline_mode = #tpu.pipeline_mode<synchronous>, transform_indices = @transform_2, window_bounds = array<i64: 32, 1>}, {pipeline_mode = #tpu.pipeline_mode<synchronous>, transform_indices = @transform_3, window_bounds = array<i64: 16, 288>}, {pipeline_mode = #tpu.pipeline_mode<synchronous>, transform_indices = @transform_4, window_bounds = array<i64: 16, 1>}, {pipeline_mode = #tpu.pipeline_mode<synchronous>, transform_indices = @transform_5, window_bounds = array<i64: 32, 16>}, {pipeline_mode = #tpu.pipeline_mode<synchronous>, transform_indices = @transform_6, window_bounds = array<i64: 32, 1>}, {pipeline_mode = #tpu.pipeline_mode<synchronous>, transform_indices = @transform_7, window_bounds = array<i64: 16, 288>}, {pipeline_mode = #tpu.pipeline_mode<synchronous>, transform_indices = @transform_8, window_bounds = array<i64: 16, 1>}, {pipeline_mode = #tpu.pipeline_mode<synchronous>, transform_indices = @transform_9, window_bounds = array<i64: 32, 16>}, {pipeline_mode = #tpu.pipeline_mode<synchronous>, transform_indices = @transform_10, window_bounds = array<i64: 32, 1>}, {pipeline_mode = #tpu.pipeline_mode<synchronous>, transform_indices = @transform_11, window_bounds = array<i64: 8, 32>}, {pipeline_mode = #tpu.pipeline_mode<synchronous>, transform_indices = @transform_12, window_bounds = array<i64: 8, 1>}, {transform_indices = @transform_13, window_bounds = array<i64: 1, 8, 24>}]} {
    %0 = tpu.iota {dimensions = array<i32: 1>} : vector<1x24xi32>
    %c6_i32 = arith.constant 6 : i32
    %c0_i32 = arith.constant 0 : i32
    %1 = arith.cmpi eq, %c6_i32, %c0_i32 : i32
    %c1_i32 = arith.constant 1 : i32
    %2 = arith.select %1, %c1_i32, %c6_i32 : i32
    %3 = vector.broadcast %2 : i32 to vector<1x24xi32>
    %4 = arith.remsi %0, %3 : vector<1x24xi32>
    %c0_i32_0 = arith.constant 0 : i32
    %5 = vector.broadcast %c0_i32_0 : i32 to vector<1x24xi32>
    %6 = arith.cmpi ne, %4, %5 : vector<1x24xi32>
    %c0_i32_1 = arith.constant 0 : i32
    %7 = vector.broadcast %c0_i32_1 : i32 to vector<1x24xi32>
    %8 = arith.cmpi slt, %4, %7 : vector<1x24xi32>
    %c0_i32_2 = arith.constant 0 : i32
    %9 = arith.cmpi slt, %2, %c0_i32_2 : i32
    %10 = vector.broadcast %9 : i1 to vector<1x24xi1>
    %11 = vector.broadcast %10 : vector<1x24xi1> to vector<1x24xi1>
    %12 = arith.xori %8, %11 : vector<1x24xi1>
    %13 = arith.andi %12, %6 : vector<1x24xi1>
    %14 = vector.broadcast %2 : i32 to vector<1x24xi32>
    %15 = arith.addi %4, %14 : vector<1x24xi32>
    %16 = arith.select %13, %15, %4 : vector<1x24xi1>, vector<1x24xi32>
    %c4_i32 = arith.constant 4 : i32
    %17 = vector.broadcast %c4_i32 : i32 to vector<1x24xi32>
    %18 = arith.cmpi slt, %16, %17 : vector<1x24xi32>
    %c0 = arith.constant 0 : index
    %c0_3 = arith.constant 0 : index
    %c0_4 = arith.constant 0 : index
    %19 = vector.load %arg1[%c0, %c0_3, %c0_4] : memref<1x32x38xbf16, #tpu.memory_space<vmem>>, vector<1x32x24xbf16>
    %20 = vector.shape_cast %19 : vector<1x32x24xbf16> to vector<32x24xbf16>
    %c0_5 = arith.constant 0 : index
    %c0_6 = arith.constant 0 : index
    %c1 = arith.constant 1 : index
    %21 = vector.load %arg1[%c0_5, %c0_6, %c1] : memref<1x32x38xbf16, #tpu.memory_space<vmem>>, vector<1x32x24xbf16>
    %22 = vector.shape_cast %21 : vector<1x32x24xbf16> to vector<32x24xbf16>
    %c0_7 = arith.constant 0 : index
    %c0_8 = arith.constant 0 : index
    %c2 = arith.constant 2 : index
    %23 = vector.load %arg1[%c0_7, %c0_8, %c2] : memref<1x32x38xbf16, #tpu.memory_space<vmem>>, vector<1x32x24xbf16>
    %24 = vector.shape_cast %23 : vector<1x32x24xbf16> to vector<32x24xbf16>
    %c0_9 = arith.constant 0 : index
    %c0_10 = arith.constant 0 : index
    %c6 = arith.constant 6 : index
    %25 = vector.load %arg1[%c0_9, %c0_10, %c6] : memref<1x32x38xbf16, #tpu.memory_space<vmem>>, vector<1x32x24xbf16>
    %26 = vector.shape_cast %25 : vector<1x32x24xbf16> to vector<32x24xbf16>
    %c0_11 = arith.constant 0 : index
    %c0_12 = arith.constant 0 : index
    %c7 = arith.constant 7 : index
    %27 = vector.load %arg1[%c0_11, %c0_12, %c7] : memref<1x32x38xbf16, #tpu.memory_space<vmem>>, vector<1x32x24xbf16>
    %28 = vector.shape_cast %27 : vector<1x32x24xbf16> to vector<32x24xbf16>
    %c0_13 = arith.constant 0 : index
    %c0_14 = arith.constant 0 : index
    %c8 = arith.constant 8 : index
    %29 = vector.load %arg1[%c0_13, %c0_14, %c8] : memref<1x32x38xbf16, #tpu.memory_space<vmem>>, vector<1x32x24xbf16>
    %30 = vector.shape_cast %29 : vector<1x32x24xbf16> to vector<32x24xbf16>
    %c0_15 = arith.constant 0 : index
    %c0_16 = arith.constant 0 : index
    %c12 = arith.constant 12 : index
    %31 = vector.load %arg1[%c0_15, %c0_16, %c12] : memref<1x32x38xbf16, #tpu.memory_space<vmem>>, vector<1x32x24xbf16>
    %32 = vector.shape_cast %31 : vector<1x32x24xbf16> to vector<32x24xbf16>
    %c0_17 = arith.constant 0 : index
    %c0_18 = arith.constant 0 : index
    %c13 = arith.constant 13 : index
    %33 = vector.load %arg1[%c0_17, %c0_18, %c13] : memref<1x32x38xbf16, #tpu.memory_space<vmem>>, vector<1x32x24xbf16>
    %34 = vector.shape_cast %33 : vector<1x32x24xbf16> to vector<32x24xbf16>
    %c0_19 = arith.constant 0 : index
    %c0_20 = arith.constant 0 : index
    %c14 = arith.constant 14 : index
    %35 = vector.load %arg1[%c0_19, %c0_20, %c14] : memref<1x32x38xbf16, #tpu.memory_space<vmem>>, vector<1x32x24xbf16>
    %36 = vector.shape_cast %35 : vector<1x32x24xbf16> to vector<32x24xbf16>
    %37 = tpu.concatenate %20, %22, %24, %26, %28, %30, %32, %34, %36 in 0 : vector<32x24xbf16>, vector<32x24xbf16>, vector<32x24xbf16>, vector<32x24xbf16>, vector<32x24xbf16>, vector<32x24xbf16>, vector<32x24xbf16>, vector<32x24xbf16>, vector<32x24xbf16> -> vector<288x24xbf16>
    %c0_21 = arith.constant 0 : index
    %c0_22 = arith.constant 0 : index
    %38 = vector.load %arg2[%c0_21, %c0_22] : memref<32x288xbf16, #tpu.memory_space<vmem>>, vector<32x288xbf16>
    %cst = arith.constant dense<0.000000e+00> : vector<32x24xf32>
    %39 = tpu.matmul %38, %37, %cst {dimension_numbers = #tpu.dot_dimension_numbers<[1], [0], [0], [1], [0, 0, 1, 1], [], []>} : vector<32x288xbf16>, vector<288x24xbf16>, vector<32x24xf32> -> vector<32x24xf32>
    %c0_23 = arith.constant 0 : index
    %c0_24 = arith.constant 0 : index
    %40 = vector.load %arg3[%c0_23, %c0_24] : memref<32x1xf32, #tpu.memory_space<vmem>>, vector<32x1xf32>
    %41 = vector.broadcast %40 : vector<32x1xf32> to vector<32x24xf32>
    %42 = arith.addf %39, %41 : vector<32x24xf32>
    %cst_25 = arith.constant 0.000000e+00 : f32
    %43 = vector.shape_cast %18 : vector<1x24xi1> to vector<1x24xi1>
    %44 = vector.broadcast %43 : vector<1x24xi1> to vector<32x24xi1>
    %45 = vector.broadcast %cst_25 : f32 to vector<32x24xf32>
    %46 = arith.select %44, %42, %45 : vector<32x24xi1>, vector<32x24xf32>
    %cst_26 = arith.constant 0.000000e+00 : f32
    %47 = vector.broadcast %cst_26 : f32 to vector<32x38xf32>
    %c0_27 = arith.constant 0 : index
    %c0_28 = arith.constant 0 : index
    %48 = vector.load %arg15[%c0_27, %c0_28] : memref<32x38xf32, #tpu.memory_space<vmem>>, vector<32x38xf32>
    tpu.vector_store %arg15[%c0_27, %c0_28], %47 {strides = array<i32>} : memref<32x38xf32, #tpu.memory_space<vmem>>, vector<32x38xf32>,
    %c0_29 = arith.constant 0 : index
    %c7_30 = arith.constant 7 : index
    %49 = vector.load %arg15[%c0_29, %c7_30] : memref<32x38xf32, #tpu.memory_space<vmem>>, vector<32x24xf32>
    tpu.vector_store %arg15[%c0_29, %c7_30], %46 {strides = array<i32>} : memref<32x38xf32, #tpu.memory_space<vmem>>, vector<32x24xf32>,
    %c0_31 = arith.constant 0 : index
    %c0_32 = arith.constant 0 : index
    %50 = vector.load %arg15[%c0_31, %c0_32] : memref<32x38xf32, #tpu.memory_space<vmem>>, vector<32x38xf32>
    %cst_33 = arith.constant 0.000000e+00 : f32
    %51 = vector.broadcast %cst_33 : f32 to vector<32x38xf32>
    %52 = arith.maximumf %50, %51 : vector<32x38xf32>
    %53 = arith.truncf %52 : vector<32x38xf32> to vector<32x38xbf16>
    %54 = vector.extract_strided_slice %53 {offsets = [0, 0], sizes = [32, 24], strides = [1, 1]} : vector<32x38xbf16> to vector<32x24xbf16>
    %55 = vector.extract_strided_slice %53 {offsets = [0, 1], sizes = [32, 24], strides = [1, 1]} : vector<32x38xbf16> to vector<32x24xbf16>
    %56 = vector.extract_strided_slice %53 {offsets = [0, 2], sizes = [32, 24], strides = [1, 1]} : vector<32x38xbf16> to vector<32x24xbf16>
    %57 = vector.extract_strided_slice %53 {offsets = [0, 6], sizes = [32, 24], strides = [1, 1]} : vector<32x38xbf16> to vector<32x24xbf16>
    %58 = vector.extract_strided_slice %53 {offsets = [0, 7], sizes = [32, 24], strides = [1, 1]} : vector<32x38xbf16> to vector<32x24xbf16>
    %59 = vector.extract_strided_slice %53 {offsets = [0, 8], sizes = [32, 24], strides = [1, 1]} : vector<32x38xbf16> to vector<32x24xbf16>
    %60 = vector.extract_strided_slice %53 {offsets = [0, 12], sizes = [32, 24], strides = [1, 1]} : vector<32x38xbf16> to vector<32x24xbf16>
    %61 = vector.extract_strided_slice %53 {offsets = [0, 13], sizes = [32, 24], strides = [1, 1]} : vector<32x38xbf16> to vector<32x24xbf16>
    %62 = vector.extract_strided_slice %53 {offsets = [0, 14], sizes = [32, 24], strides = [1, 1]} : vector<32x38xbf16> to vector<32x24xbf16>
    %63 = tpu.concatenate %54, %55, %56, %57, %58, %59, %60, %61, %62 in 0 : vector<32x24xbf16>, vector<32x24xbf16>, vector<32x24xbf16>, vector<32x24xbf16>, vector<32x24xbf16>, vector<32x24xbf16>, vector<32x24xbf16>, vector<32x24xbf16>, vector<32x24xbf16> -> vector<288x24xbf16>
    %c0_34 = arith.constant 0 : index
    %c0_35 = arith.constant 0 : index
    %64 = vector.load %arg4[%c0_34, %c0_35] : memref<16x288xbf16, #tpu.memory_space<vmem>>, vector<16x288xbf16>
    %cst_36 = arith.constant dense<0.000000e+00> : vector<16x24xf32>
    %65 = tpu.matmul %64, %63, %cst_36 {dimension_numbers = #tpu.dot_dimension_numbers<[1], [0], [0], [1], [0, 0, 1, 1], [], []>} : vector<16x288xbf16>, vector<288x24xbf16>, vector<16x24xf32> -> vector<16x24xf32>
    %c0_37 = arith.constant 0 : index
    %c0_38 = arith.constant 0 : index
    %66 = vector.load %arg5[%c0_37, %c0_38] : memref<16x1xf32, #tpu.memory_space<vmem>>, vector<16x1xf32>
    %67 = vector.broadcast %66 : vector<16x1xf32> to vector<16x24xf32>
    %68 = arith.addf %65, %67 : vector<16x24xf32>
    %cst_39 = arith.constant 0.000000e+00 : f32
    %69 = vector.broadcast %cst_39 : f32 to vector<16x24xf32>
    %70 = arith.maximumf %68, %69 : vector<16x24xf32>
    %71 = arith.truncf %70 : vector<16x24xf32> to vector<16x24xbf16>
    %c0_40 = arith.constant 0 : index
    %c0_41 = arith.constant 0 : index
    %72 = vector.load %arg6[%c0_40, %c0_41] : memref<32x16xbf16, #tpu.memory_space<vmem>>, vector<32x16xbf16>
    %cst_42 = arith.constant dense<0.000000e+00> : vector<32x24xf32>
    %73 = tpu.matmul %72, %71, %cst_42 {dimension_numbers = #tpu.dot_dimension_numbers<[1], [0], [0], [1], [0, 0, 1, 1], [], []>} : vector<32x16xbf16>, vector<16x24xbf16>, vector<32x24xf32> -> vector<32x24xf32>
    %c0_43 = arith.constant 0 : index
    %c0_44 = arith.constant 0 : index
    %74 = vector.load %arg7[%c0_43, %c0_44] : memref<32x1xf32, #tpu.memory_space<vmem>>, vector<32x1xf32>
    %75 = vector.broadcast %74 : vector<32x1xf32> to vector<32x24xf32>
    %76 = arith.addf %73, %75 : vector<32x24xf32>
    %c0_45 = arith.constant 0 : index
    %c7_46 = arith.constant 7 : index
    %77 = vector.load %arg15[%c0_45, %c7_46] : memref<32x38xf32, #tpu.memory_space<vmem>>, vector<32x24xf32>
    %78 = arith.addf %76, %77 : vector<32x24xf32>
    %cst_47 = arith.constant 0.000000e+00 : f32
    %79 = vector.shape_cast %18 : vector<1x24xi1> to vector<1x24xi1>
    %80 = vector.broadcast %79 : vector<1x24xi1> to vector<32x24xi1>
    %81 = vector.broadcast %cst_47 : f32 to vector<32x24xf32>
    %82 = arith.select %80, %78, %81 : vector<32x24xi1>, vector<32x24xf32>
    %c0_48 = arith.constant 0 : index
    %c7_49 = arith.constant 7 : index
    %83 = vector.load %arg15[%c0_48, %c7_49] : memref<32x38xf32, #tpu.memory_space<vmem>>, vector<32x24xf32>
    tpu.vector_store %arg15[%c0_48, %c7_49], %82 {strides = array<i32>} : memref<32x38xf32, #tpu.memory_space<vmem>>, vector<32x24xf32>,
    %c0_50 = arith.constant 0 : index
    %c0_51 = arith.constant 0 : index
    %84 = vector.load %arg15[%c0_50, %c0_51] : memref<32x38xf32, #tpu.memory_space<vmem>>, vector<32x38xf32>
    %cst_52 = arith.constant 0.000000e+00 : f32
    %85 = vector.broadcast %cst_52 : f32 to vector<32x38xf32>
    %86 = arith.maximumf %84, %85 : vector<32x38xf32>
    %87 = arith.truncf %86 : vector<32x38xf32> to vector<32x38xbf16>
    %88 = vector.extract_strided_slice %87 {offsets = [0, 0], sizes = [32, 24], strides = [1, 1]} : vector<32x38xbf16> to vector<32x24xbf16>
    %89 = vector.extract_strided_slice %87 {offsets = [0, 1], sizes = [32, 24], strides = [1, 1]} : vector<32x38xbf16> to vector<32x24xbf16>
    %90 = vector.extract_strided_slice %87 {offsets = [0, 2], sizes = [32, 24], strides = [1, 1]} : vector<32x38xbf16> to vector<32x24xbf16>
    %91 = vector.extract_strided_slice %87 {offsets = [0, 6], sizes = [32, 24], strides = [1, 1]} : vector<32x38xbf16> to vector<32x24xbf16>
    %92 = vector.extract_strided_slice %87 {offsets = [0, 7], sizes = [32, 24], strides = [1, 1]} : vector<32x38xbf16> to vector<32x24xbf16>
    %93 = vector.extract_strided_slice %87 {offsets = [0, 8], sizes = [32, 24], strides = [1, 1]} : vector<32x38xbf16> to vector<32x24xbf16>
    %94 = vector.extract_strided_slice %87 {offsets = [0, 12], sizes = [32, 24], strides = [1, 1]} : vector<32x38xbf16> to vector<32x24xbf16>
    %95 = vector.extract_strided_slice %87 {offsets = [0, 13], sizes = [32, 24], strides = [1, 1]} : vector<32x38xbf16> to vector<32x24xbf16>
    %96 = vector.extract_strided_slice %87 {offsets = [0, 14], sizes = [32, 24], strides = [1, 1]} : vector<32x38xbf16> to vector<32x24xbf16>
    %97 = tpu.concatenate %88, %89, %90, %91, %92, %93, %94, %95, %96 in 0 : vector<32x24xbf16>, vector<32x24xbf16>, vector<32x24xbf16>, vector<32x24xbf16>, vector<32x24xbf16>, vector<32x24xbf16>, vector<32x24xbf16>, vector<32x24xbf16>, vector<32x24xbf16> -> vector<288x24xbf16>
    %c0_53 = arith.constant 0 : index
    %c0_54 = arith.constant 0 : index
    %98 = vector.load %arg8[%c0_53, %c0_54] : memref<16x288xbf16, #tpu.memory_space<vmem>>, vector<16x288xbf16>
    %cst_55 = arith.constant dense<0.000000e+00> : vector<16x24xf32>
    %99 = tpu.matmul %98, %97, %cst_55 {dimension_numbers = #tpu.dot_dimension_numbers<[1], [0], [0], [1], [0, 0, 1, 1], [], []>} : vector<16x288xbf16>, vector<288x24xbf16>, vector<16x24xf32> -> vector<16x24xf32>
    %c0_56 = arith.constant 0 : index
    %c0_57 = arith.constant 0 : index
    %100 = vector.load %arg9[%c0_56, %c0_57] : memref<16x1xf32, #tpu.memory_space<vmem>>, vector<16x1xf32>
    %101 = vector.broadcast %100 : vector<16x1xf32> to vector<16x24xf32>
    %102 = arith.addf %99, %101 : vector<16x24xf32>
    %cst_58 = arith.constant 0.000000e+00 : f32
    %103 = vector.broadcast %cst_58 : f32 to vector<16x24xf32>
    %104 = arith.maximumf %102, %103 : vector<16x24xf32>
    %105 = arith.truncf %104 : vector<16x24xf32> to vector<16x24xbf16>
    %c0_59 = arith.constant 0 : index
    %c0_60 = arith.constant 0 : index
    %106 = vector.load %arg10[%c0_59, %c0_60] : memref<32x16xbf16, #tpu.memory_space<vmem>>, vector<32x16xbf16>
    %cst_61 = arith.constant dense<0.000000e+00> : vector<32x24xf32>
    %107 = tpu.matmul %106, %105, %cst_61 {dimension_numbers = #tpu.dot_dimension_numbers<[1], [0], [0], [1], [0, 0, 1, 1], [], []>} : vector<32x16xbf16>, vector<16x24xbf16>, vector<32x24xf32> -> vector<32x24xf32>
    %c0_62 = arith.constant 0 : index
    %c0_63 = arith.constant 0 : index
    %108 = vector.load %arg11[%c0_62, %c0_63] : memref<32x1xf32, #tpu.memory_space<vmem>>, vector<32x1xf32>
    %109 = vector.broadcast %108 : vector<32x1xf32> to vector<32x24xf32>
    %110 = arith.addf %107, %109 : vector<32x24xf32>
    %c0_64 = arith.constant 0 : index
    %c7_65 = arith.constant 7 : index
    %111 = vector.load %arg15[%c0_64, %c7_65] : memref<32x38xf32, #tpu.memory_space<vmem>>, vector<32x24xf32>
    %112 = arith.addf %110, %111 : vector<32x24xf32>
    %cst_66 = arith.constant 0.000000e+00 : f32
    %113 = vector.shape_cast %18 : vector<1x24xi1> to vector<1x24xi1>
    %114 = vector.broadcast %113 : vector<1x24xi1> to vector<32x24xi1>
    %115 = vector.broadcast %cst_66 : f32 to vector<32x24xf32>
    %116 = arith.select %114, %112, %115 : vector<32x24xi1>, vector<32x24xf32>
    %c0_67 = arith.constant 0 : index
    %c7_68 = arith.constant 7 : index
    %117 = vector.load %arg15[%c0_67, %c7_68] : memref<32x38xf32, #tpu.memory_space<vmem>>, vector<32x24xf32>
    tpu.vector_store %arg15[%c0_67, %c7_68], %116 {strides = array<i32>} : memref<32x38xf32, #tpu.memory_space<vmem>>, vector<32x24xf32>,
    %c0_69 = arith.constant 0 : index
    %c7_70 = arith.constant 7 : index
    %118 = vector.load %arg15[%c0_69, %c7_70] : memref<32x38xf32, #tpu.memory_space<vmem>>, vector<32x24xf32>
    %cst_71 = arith.constant 0.000000e+00 : f32
    %119 = vector.broadcast %cst_71 : f32 to vector<32x24xf32>
    %120 = arith.maximumf %118, %119 : vector<32x24xf32>
    %121 = arith.truncf %120 : vector<32x24xf32> to vector<32x24xbf16>
    %c0_72 = arith.constant 0 : index
    %c0_73 = arith.constant 0 : index
    %122 = vector.load %arg12[%c0_72, %c0_73] : memref<8x32xbf16, #tpu.memory_space<vmem>>, vector<8x32xbf16>
    %cst_74 = arith.constant dense<0.000000e+00> : vector<8x24xf32>
    %123 = tpu.matmul %122, %121, %cst_74 {dimension_numbers = #tpu.dot_dimension_numbers<[1], [0], [0], [1], [0, 0, 1, 1], [], []>} : vector<8x32xbf16>, vector<32x24xbf16>, vector<8x24xf32> -> vector<8x24xf32>
    %c0_75 = arith.constant 0 : index
    %c0_76 = arith.constant 0 : index
    %124 = vector.load %arg13[%c0_75, %c0_76] : memref<8x1xf32, #tpu.memory_space<vmem>>, vector<8x1xf32>
    %125 = vector.broadcast %124 : vector<8x1xf32> to vector<8x24xf32>
    %126 = arith.addf %123, %125 : vector<8x24xf32>
    %c0_77 = arith.constant 0 : index
    %c0_78 = arith.constant 0 : index
    %c0_79 = arith.constant 0 : index
    %127 = vector.load %arg14[%c0_77, %c0_78, %c0_79] : memref<1x8x24xf32, #tpu.memory_space<vmem>>, vector<1x8x24xf32>
    %128 = vector.shape_cast %127 : vector<1x8x24xf32> to vector<8x24xf32>
    %129 = vector.shape_cast %126 : vector<8x24xf32> to vector<1x8x24xf32>
    tpu.vector_store %arg14[%c0_77, %c0_78, %c0_79], %129 {strides = array<i32>} : memref<1x8x24xf32, #tpu.memory_space<vmem>>, vector<1x8x24xf32>,
    return
  }
  func.func @transform_0(%arg0: i32) -> (i32, i32, i32) {
    %c0_i32 = arith.constant 0 : i32
    %c0_i32_0 = arith.constant 0 : i32
    %c0_i32_1 = arith.constant 0 : i32
    return %arg0, %c0_i32, %c0_i32_0 : i32, i32, i32
  }
  func.func @transform_1(%arg0: i32) -> (i32, i32) {
    %c0_i32 = arith.constant 0 : i32
    %c0_i32_0 = arith.constant 0 : i32
    %c0_i32_1 = arith.constant 0 : i32
    return %c0_i32, %c0_i32_0 : i32, i32
  }
  func.func @transform_2(%arg0: i32) -> (i32, i32) {
    %c0_i32 = arith.constant 0 : i32
    %c0_i32_0 = arith.constant 0 : i32
    %c0_i32_1 = arith.constant 0 : i32
    return %c0_i32, %c0_i32_0 : i32, i32
  }
  func.func @transform_3(%arg0: i32) -> (i32, i32) {
    %c0_i32 = arith.constant 0 : i32
    %c0_i32_0 = arith.constant 0 : i32
    %c0_i32_1 = arith.constant 0 : i32
    return %c0_i32, %c0_i32_0 : i32, i32
  }
  func.func @transform_4(%arg0: i32) -> (i32, i32) {
    %c0_i32 = arith.constant 0 : i32
    %c0_i32_0 = arith.constant 0 : i32
    %c0_i32_1 = arith.constant 0 : i32
    return %c0_i32, %c0_i32_0 : i32, i32
  }
  func.func @transform_5(%arg0: i32) -> (i32, i32) {
    %c0_i32 = arith.constant 0 : i32
    %c0_i32_0 = arith.constant 0 : i32
    %c0_i32_1 = arith.constant 0 : i32
    return %c0_i32, %c0_i32_0 : i32, i32
  }
  func.func @transform_6(%arg0: i32) -> (i32, i32) {
    %c0_i32 = arith.constant 0 : i32
    %c0_i32_0 = arith.constant 0 : i32
    %c0_i32_1 = arith.constant 0 : i32
    return %c0_i32, %c0_i32_0 : i32, i32
  }
  func.func @transform_7(%arg0: i32) -> (i32, i32) {
    %c0_i32 = arith.constant 0 : i32
    %c0_i32_0 = arith.constant 0 : i32
    %c0_i32_1 = arith.constant 0 : i32
    return %c0_i32, %c0_i32_0 : i32, i32
  }
  func.func @transform_8(%arg0: i32) -> (i32, i32) {
    %c0_i32 = arith.constant 0 : i32
    %c0_i32_0 = arith.constant 0 : i32
    %c0_i32_1 = arith.constant 0 : i32
    return %c0_i32, %c0_i32_0 : i32, i32
  }
  func.func @transform_9(%arg0: i32) -> (i32, i32) {
    %c0_i32 = arith.constant 0 : i32
    %c0_i32_0 = arith.constant 0 : i32
    %c0_i32_1 = arith.constant 0 : i32
    return %c0_i32, %c0_i32_0 : i32, i32
  }
  func.func @transform_10(%arg0: i32) -> (i32, i32) {
    %c0_i32 = arith.constant 0 : i32
    %c0_i32_0 = arith.constant 0 : i32
    %c0_i32_1 = arith.constant 0 : i32
    return %c0_i32, %c0_i32_0 : i32, i32
  }
  func.func @transform_11(%arg0: i32) -> (i32, i32) {
    %c0_i32 = arith.constant 0 : i32
    %c0_i32_0 = arith.constant 0 : i32
    %c0_i32_1 = arith.constant 0 : i32
    return %c0_i32, %c0_i32_0 : i32, i32
  }
  func.func @transform_12(%arg0: i32) -> (i32, i32) {
    %c0_i32 = arith.constant 0 : i32
    %c0_i32_0 = arith.constant 0 : i32
    %c0_i32_1 = arith.constant 0 : i32
    return %c0_i32, %c0_i32_0 : i32, i32
  }
  func.func @transform_13(%arg0: i32) -> (i32, i32, i32) {
    %c0_i32 = arith.constant 0 : i32
    %c0_i32_0 = arith.constant 0 : i32
    %c0_i32_1 = arith.constant 0 : i32
    return %arg0, %c0_i32, %c0_i32_0 : i32, i32, i32
  }
}

</mosaic_0001>

<llo_original>
// kernel: encoder_forward.3
$region0: #{encoder_forward.3}
  #allocation0 [shape = 'u32[]', space=smem, size = 0x4, offset = 0x4, fixed_abs, tag = 'smem constant byte address 0x4 - core index']
  #allocation1 [shape = 'u32[144,128]{1,0:T(1,128)}', space=vmem, size = 0x12000, scoped, tag = 'internal scratch']
  %s0 = inlined_call_operand.vmem [shape: bf16[2,16,82], index: 0, kind: input, shape index: {}]
  %s1 = inlined_call_operand.vmem [shape: bf16[16,64], index: 1, kind: input, shape index: {}]
  %s2 = inlined_call_operand.vmem [shape: f32[16,1], index: 2, kind: input, shape index: {}]
  %s3 = inlined_call_operand.vmem [shape: bf16[2,16,72], index: 3, kind: output, shape index: {}]
  %s4 = sld [smem:[#allocation0]]
  $region45: #{encoder_forward.3} parent=0
    _
  %s6 = ssub.s32 1, %s4
  %s7 = scalar_select 0, %s6, %s4
  loop: start=0, step=1, limit=4
  $region2: #{encoder_forward.3} parent=0 // loop_pre_header
    _
  $region3: #{encoder_forward.3} parent=0 // loop_header
    %s9 = sphi 0, %s13
    %p10 = scmp.ge.s32.totalorder %s9, 4
    %s19 = sphi 0, %s21
    %s22 = sphi 0, %s19
    %s23 = sphi 0, %s22
    %s39 = sphi 0, %s23
    %s43 = sphi 0, %s43
    %s45 = sphi 0, %s43
    %s46 = sphi 0, %s45
    %s60 = sphi 0, %s46
    %s64 = sphi 0, %s64
    %s66 = sphi 0, %s64
    %s67 = sphi 0, %s66
    %s81 = sphi 0, %s67
    %s87 = sphi 0, %s89
    %s90 = sphi 0, %s87
    %s91 = sphi 0, %s90
    %s107 = sphi 0, %s91
  $region4: #{encoder_forward.3} parent=0 // loop_header_branch
    %12 = sbr.rel (%p10) target = $region8
  $region5: #{encoder_forward.3} parent=0 // loop_body
    %s14 = ssub.s32 %s9, 1
    %s15 = ssub.s32 %s9, 2
    %s16 = sadd.s32 %s9, 1
    %s17 = ssub.s32 %s9, %s16
    %p18 = scmp.eq.s32.totalorder %s17, 0
    %s20 = sadd.s32 %s19, 1
    %s21 = scalar_select %p18, %s19, %s20
    %p24 = pneg %p18
    %p25 = scmp.eq.s32.totalorder %s9, 1
    %p26 = por %p24, %p25
    %p27 = scmp.ne.s32.totalorder %s19, %s22
    %p28 = scmp.eq.s32.totalorder %s9, 0
    %p29 = por %p27, %p28
    %p30 = scmp.ne.s32.totalorder %s19, %s22
    %p31 = scmp.eq.s32.totalorder %s14, 1
    %p32 = por %p30, %p31
    %p33 = scmp.ne.s32.totalorder %s22, %s23
    %p34 = scmp.eq.s32.totalorder %s14, 0
    %p35 = por %p33, %p34
    %p36 = scmp.ne.s32.totalorder %s22, %s23
    %p37 = scmp.eq.s32.totalorder %s15, 1
    %p38 = por %p36, %p37
    %p40 = scmp.ne.s32.totalorder %s23, %s39
    %p41 = scmp.eq.s32.totalorder %s15, 0
    %p42 = por %p40, %p41
    %s44 = sadd.s32 %s43, 1
    %p47 = scmp.eq.s32.totalorder %s9, 1
    %p48 = scmp.ne.s32.totalorder %s43, %s45
    %p49 = scmp.eq.s32.totalorder %s9, 0
    %p50 = por %p48, %p49
    %p51 = scmp.ne.s32.totalorder %s43, %s45
    %p52 = scmp.eq.s32.totalorder %s14, 1
    %p53 = por %p51, %p52
    %p54 = scmp.ne.s32.totalorder %s45, %s46
    %p55 = scmp.eq.s32.totalorder %s14, 0
    %p56 = por %p54, %p55
    %p57 = scmp.ne.s32.totalorder %s45, %s46
    %p58 = scmp.eq.s32.totalorder %s15, 1
    %p59 = por %p57, %p58
    %p61 = scmp.ne.s32.totalorder %s46, %s60
    %p62 = scmp.eq.s32.totalorder %s15, 0
    %p63 = por %p61, %p62
    %s65 = sadd.s32 %s64, 1
    %p68 = scmp.eq.s32.totalorder %s9, 1
    %p69 = scmp.ne.s32.totalorder %s64, %s66
    %p70 = scmp.eq.s32.totalorder %s9, 0
    %p71 = por %p69, %p70
    %p72 = scmp.ne.s32.totalorder %s64, %s66
    %p73 = scmp.eq.s32.totalorder %s14, 1
    %p74 = por %p72, %p73
    %p75 = scmp.ne.s32.totalorder %s66, %s67
    %p76 = scmp.eq.s32.totalorder %s14, 0
    %p77 = por %p75, %p76
    %p78 = scmp.ne.s32.totalorder %s66, %s67
    %p79 = scmp.eq.s32.totalorder %s15, 1
    %p80 = por %p78, %p79
    %p82 = scmp.ne.s32.totalorder %s67, %s81
    %p83 = scmp.eq.s32.totalorder %s15, 0
    %p84 = por %p82, %p83
    %s85 = ssub.s32 %s9, %s16
    %p86 = scmp.eq.s32.totalorder %s85, 0
    %s88 = sadd.s32 %s87, 1
    %s89 = scalar_select %p86, %s87, %s88
    %p92 = pneg %p86
    %p93 = scmp.eq.s32.totalorder %s9, 1
    %p94 = por %p92, %p93
    %p95 = scmp.ne.s32.totalorder %s87, %s90
    %p96 = scmp.eq.s32.totalorder %s9, 0
    %p97 = por %p95, %p96
    %p98 = scmp.ne.s32.totalorder %s87, %s90
    %p99 = scmp.eq.s32.totalorder %s14, 1
    %p100 = por %p98, %p99
    %p101 = scmp.ne.s32.totalorder %s90, %s91
    %p102 = scmp.eq.s32.totalorder %s14, 0
    %p103 = por %p101, %p102
    %p104 = scmp.ne.s32.totalorder %s90, %s91
    %p105 = scmp.eq.s32.totalorder %s15, 1
    %p106 = por %p104, %p105
    %p108 = scmp.ne.s32.totalorder %s91, %s107
    %p109 = scmp.eq.s32.totalorder %s15, 0
    %p110 = por %p108, %p109
    %p111 = scmp.le.s32.totalorder 1, %s9
    %p112 = scmp.lt.s32.totalorder %s9, 3
    %p113 = pnand %p111, %p112
    %p114 = pneg %p113
    // Predicated region
    $region9: #{encoder_forward.3} parent=5 // pred_check
      _
    $region10: #{encoder_forward.3} parent=5 // pred_check_branch
      %116 = sbr.rel (%p113) target = $region12
    $region11: #{encoder_forward.3} parent=5 // pred_region
      %s117 = ssub.s32 %s9, 1
      // Predicated region
      $region13: #{encoder_forward.3} parent=11 // pred_check
        %p118 = pneg %p56
      $region14: #{encoder_forward.3} parent=11 // pred_check_branch
        %120 = sbr.rel (%p118) target = $region16
      $region15: #{encoder_forward.3} parent=11 // pred_region
        _
      $region16: #{encoder_forward.3} parent=11 // pred_fallthru
        _
      // Predicated region
      $region17: #{encoder_forward.3} parent=11 // pred_check
        %p121 = pneg %p77
      $region18: #{encoder_forward.3} parent=11 // pred_check_branch
        %123 = sbr.rel (%p121) target = $region20
      $region19: #{encoder_forward.3} parent=11 // pred_region
        _
      $region20: #{encoder_forward.3} parent=11 // pred_fallthru
        _
    $region12: #{encoder_forward.3} parent=5 // pred_fallthru
      _
    %p124 = scmp.lt.s32.totalorder %s9, 2
    // Predicated region
    $region21: #{encoder_forward.3} parent=5 // pred_check
      %p125 = pneg %p124
    $region22: #{encoder_forward.3} parent=5 // pred_check_branch
      %127 = sbr.rel (%p125) target = $region24
    $region23: #{encoder_forward.3} parent=5 // pred_region
      // Predicated region
      $region25: #{encoder_forward.3} parent=23 // pred_check
        %p128 = pneg %p29
      $region26: #{encoder_forward.3} parent=23 // pred_check_branch
        %130 = sbr.rel (%p128) target = $region28
      $region27: #{encoder_forward.3} parent=23 // pred_region
        %p131 = scmp.lt.s32.totalorder %s9, 1
        %s132 = scalar_select %p131, %s9, 1
        %s133 = smul.addr %s132, 2
        %s134 = smul.addr %s133, 4
        %s135 = scalar_lea.vmem %s0, %s134
      $region28: #{encoder_forward.3} parent=23 // pred_fallthru
        _
    $region24: #{encoder_forward.3} parent=5 // pred_fallthru
      _
    %p136 = scmp.le.s32.totalorder 1, %s9
    %p137 = scmp.lt.s32.totalorder %s9, 3
    %p138 = pnand %p136, %p137
    %p139 = pneg %p138
    // Predicated region
    $region29: #{encoder_forward.3} parent=5 // pred_check
      _
    $region30: #{encoder_forward.3} parent=5 // pred_check_branch
      %141 = sbr.rel (%p138) target = $region32
    $region31: #{encoder_forward.3} parent=5 // pred_region
      %s142 = ssub.s32 %s9, 1
      %p143 = scmp.lt.s32.totalorder %s14, 1
      %s144 = scalar_select %p143, %s14, 1
      %s145 = smul.addr %s144, 2
      %s146 = smul.addr %s145, 4
      %s147 = scalar_lea.vmem %s0, %s146
      %p148 = pneg %p35
      %p149 = pneg %p32
      %p150 = pneg %p56
      %p151 = pneg %p53
      %p152 = pneg %p77
      %p153 = pneg %p74
      %p154 = pneg %p103
      %p155 = pneg %p100
      %p156 = scmp.lt.s32.totalorder %s14, 1
      %s157 = scalar_select %p156, %s14, 1
      %s158 = smul.addr %s157, 2
      %s159 = smul.addr %s158, 4
      %s160 = scalar_lea.vmem %s3, %s159
      %p161 = scmp.lt.s32.totalorder %s14, 1
      %s162 = scalar_select %p161, %s14, 1
      %s163 = smul.addr %s162, 2
      %s164 = smul.addr %s163, 4
      %s165 = scalar_lea.vmem %s0, %s164
      %p166 = scmp.lt.s32.totalorder %s14, 1
      %s167 = scalar_select %p166, %s14, 1
      %s168 = smul.addr %s167, 2
      %s169 = smul.addr %s168, 4
      %s170 = scalar_lea.vmem %s3, %s169
      %v172 = vld [vmem:[%s165] sm:$0xf]
      %v173 = vld [vmem:[%s165 + $0x4] sm:$0xf]
      %v176 = vunpack.c.l.b16 %v172
      %v177 = vunpack.c.l.b16 %v173
      %v178 = vpack.c.b16 %v177, %v176
      %180 = vrot.lane.b32.xlu0 %v178, 127
      %v181 = vpop.permute.xlu0 %180
      %183 = vrot.lane.b32.xlu0 %v178, 119
      %v184 = vpop.permute.xlu0 %183
      %186 = vrot.lane.b32.xlu0 %v178, 118
      %v187 = vpop.permute.xlu0 %186
      %v189 = vld [vmem:[%s1] sm:$0xf]
      %v190 = vld [vmem:[%s1 + $0x4] sm:$0xf]
      %v191 = vld [vmem:[%s2] sm:$0xff]
      %v192 = vld [vmem:[%s2 + $0x8] sm:$0xff]
      %194 = vset.pattern.permute.xlu0 0
      %195 = vperm.xlu0 %194, %v191
      %v196 = vpop.permute.xlu0 %195
      %199 = vset.pattern.permute.xlu0 0
      %200 = vperm.xlu0 %199, %v192
      %v201 = vpop.permute.xlu0 %200
      %v205 = vunpack.c.l.b16 %v189
      %v206 = vunpack.c.l.b16 %v190
      %v207 = vpack.c.b16 %v206, %v205
      %vm208 = vcmask 523264
      %v210 = vsel %vm208, %v207, 0
      %212 = vmatprep.subr.bf16.mxu0 0
      %213 = vmatpush1.bf16.msra.mxu0 %v178
      %214 = vmatprep.subr.bf16.mxu0 0
      %215 = vmatpush1.bf16.msra.mxu0 %v181
      %216 = vmatprep.subr.bf16.mxu0 0
      %217 = vmatpush1.bf16.msra.mxu0 %v184
      %218 = vmatprep.subr.bf16.mxu0 0
      %219 = vmatpush1.bf16.msra.mxu0 %v187
      %220 = vmatprep.subr.bf16.mxu0 0
      %221 = vmatpush1.bf16.msra.mxu0 0
      %222 = vmatprep.subr.bf16.mxu0 0
      %223 = vmatpush1.bf16.msra.mxu0 0
      %224 = vmatprep.subr.bf16.mxu0 0
      %225 = vmatpush1.bf16.msra.mxu0 0
      %226 = vmatprep.subr.bf16.mxu0 0
      %227 = vmatpush1.bf16.msra.mxu0 0
      %228 = vmatprep.subr.bf16.mxu0 0
      %229 = vmatpush1.bf16.msra.mxu0 0
      %230 = vmatprep.subr.bf16.mxu0 0
      %231 = vmatpush1.bf16.msra.mxu0 0
      %232 = vmatprep.subr.bf16.mxu0 0
      %233 = vmatpush1.bf16.msra.mxu0 0
      %234 = vmatprep.subr.bf16.mxu0 0
      %235 = vmatpush1.bf16.msra.mxu0 0
      %236 = vmatprep.subr.bf16.mxu0 0
      %237 = vmatpush1.bf16.msra.mxu0 0
      %238 = vmatprep.subr.bf16.mxu0 0
      %239 = vmatpush1.bf16.msra.mxu0 0
      %240 = vmatprep.subr.bf16.mxu0 0
      %241 = vmatpush1.bf16.msra.mxu0 0
      %242 = vmatprep.subr.bf16.mxu0 0
      %243 = vmatpush1.bf16.msra.mxu0 0
      %244 = vmatprep.mubr.bf16.mxu0 0
      %245 = vmatmul.mubr.bf16.gmra.mrb[0].mxu0 %v210
      %v246 = vpop.f32.mrb[0].mxu0
      %v247 = vadd.f32 %v196, %v246
      %v248 = vpop.f32.mrb[0].mxu0
      %v249 = vpop.f32.mrb[0].mxu0
      %v250 = vadd.f32 %v201, %v249
      %v251 = vpop.f32.mrb[0].mxu0
      %252 = vdwg.mxu0
      %v253 = vmax.f32 %v247, 0.0
      %v254 = vmax.f32 %v250, 0.0
      %v255 = vpack.c.bf16 %v254, %v253
      %v257 = vunpack.c.l.b16 %v255
      %v258 = vunpack.c.h.b16 %v255
      %v259 = vpack.c.b16 %v257, %v257
      %v260 = vpack.c.b16 %v258, %v258
      %vm263 = vcmask 584704
      %264 = vst.msk [vmem:[%s170] sm:$0xf] %vm263, %v259
      %265 = vst.msk [vmem:[%s170 + $0x4] sm:$0xf] %vm263, %v260
      %p266 = scmp.lt.s32.totalorder %s14, 1
      %s267 = scalar_select %p266, %s14, 1
      %s268 = smul.addr %s267, 2
      %s269 = smul.addr %s268, 4
      %s270 = scalar_lea.vmem %s3, %s269
      // Predicated region
      $region33: #{encoder_forward.3} parent=31 // pred_check
        %p271 = pneg %p100
      $region34: #{encoder_forward.3} parent=31 // pred_check_branch
        %273 = sbr.rel (%p271) target = $region36
      $region35: #{encoder_forward.3} parent=31 // pred_region
        _
      $region36: #{encoder_forward.3} parent=31 // pred_fallthru
        _
    $region32: #{encoder_forward.3} parent=5 // pred_fallthru
      _
    %p274 = scmp.le.s32.totalorder 2, %s9
    // Predicated region
    $region37: #{encoder_forward.3} parent=5 // pred_check
      %p275 = pneg %p274
    $region38: #{encoder_forward.3} parent=5 // pred_check_branch
      %277 = sbr.rel (%p275) target = $region40
    $region39: #{encoder_forward.3} parent=5 // pred_region
      %s278 = ssub.s32 %s9, 2
      // Predicated region
      $region41: #{encoder_forward.3} parent=39 // pred_check
        %p279 = pneg %p106
      $region42: #{encoder_forward.3} parent=39 // pred_check_branch
        %281 = sbr.rel (%p279) target = $region44
      $region43: #{encoder_forward.3} parent=39 // pred_region
        %p282 = scmp.lt.s32.totalorder %s15, 1
        %s283 = scalar_select %p282, %s15, 1
        %s284 = smul.addr %s283, 2
        %s285 = smul.addr %s284, 4
        %s286 = scalar_lea.vmem %s3, %s285
      $region44: #{encoder_forward.3} parent=39 // pred_fallthru
        _
    $region40: #{encoder_forward.3} parent=5 // pred_fallthru
      _
  $region6: #{encoder_forward.3} parent=0 // loop_footer
    %s13 = sadd.s32 1, %s9
  $region7: #{encoder_forward.3} parent=0 // loop_footer_branch
    %8 = sbr.rel target = $region3
  $region8: #{encoder_forward.3} parent=0 // loop_exit
    _

// kernel: encoder_forward.4
$region0: #{encoder_forward.4}
  #allocation0 [shape = 'u32[]', space=smem, size = 0x4, offset = 0x4, fixed_abs, tag = 'smem constant byte address 0x4 - core index']
  #allocation1 [shape = 'u32[144,128]{1,0:T(1,128)}', space=vmem, size = 0x12000, scoped, tag = 'internal scratch']
  %s0 = inlined_call_operand.vmem [shape: bf16[2,64,26], index: 0, kind: input, shape index: {}]
  %s1 = inlined_call_operand.vmem [shape: bf16[32,256], index: 1, kind: input, shape index: {}]
  %s2 = inlined_call_operand.vmem [shape: f32[32,1], index: 2, kind: input, shape index: {}]
  %s3 = inlined_call_operand.vmem [shape: bf16[2,32,20], index: 3, kind: output, shape index: {}]
  %s4 = sld [smem:[#allocation0]]
  $region45: #{encoder_forward.4} parent=0
    _
  %s6 = ssub.s32 1, %s4
  %s7 = scalar_select 0, %s6, %s4
  loop: start=0, step=1, limit=4
  $region2: #{encoder_forward.4} parent=0 // loop_pre_header
    _
  $region3: #{encoder_forward.4} parent=0 // loop_header
    %s9 = sphi 0, %s13
    %p10 = scmp.ge.s32.totalorder %s9, 4
    %s19 = sphi 0, %s21
    %s22 = sphi 0, %s19
    %s23 = sphi 0, %s22
    %s39 = sphi 0, %s23
    %s43 = sphi 0, %s43
    %s45 = sphi 0, %s43
    %s46 = sphi 0, %s45
    %s60 = sphi 0, %s46
    %s64 = sphi 0, %s64
    %s66 = sphi 0, %s64
    %s67 = sphi 0, %s66
    %s81 = sphi 0, %s67
    %s87 = sphi 0, %s89
    %s90 = sphi 0, %s87
    %s91 = sphi 0, %s90
    %s107 = sphi 0, %s91
  $region4: #{encoder_forward.4} parent=0 // loop_header_branch
    %12 = sbr.rel (%p10) target = $region8
  $region5: #{encoder_forward.4} parent=0 // loop_body
    %s14 = ssub.s32 %s9, 1
    %s15 = ssub.s32 %s9, 2
    %s16 = sadd.s32 %s9, 1
    %s17 = ssub.s32 %s9, %s16
    %p18 = scmp.eq.s32.totalorder %s17, 0
    %s20 = sadd.s32 %s19, 1
    %s21 = scalar_select %p18, %s19, %s20
    %p24 = pneg %p18
    %p25 = scmp.eq.s32.totalorder %s9, 1
    %p26 = por %p24, %p25
    %p27 = scmp.ne.s32.totalorder %s19, %s22
    %p28 = scmp.eq.s32.totalorder %s9, 0
    %p29 = por %p27, %p28
    %p30 = scmp.ne.s32.totalorder %s19, %s22
    %p31 = scmp.eq.s32.totalorder %s14, 1
    %p32 = por %p30, %p31
    %p33 = scmp.ne.s32.totalorder %s22, %s23
    %p34 = scmp.eq.s32.totalorder %s14, 0
    %p35 = por %p33, %p34
    %p36 = scmp.ne.s32.totalorder %s22, %s23
    %p37 = scmp.eq.s32.totalorder %s15, 1
    %p38 = por %p36, %p37
    %p40 = scmp.ne.s32.totalorder %s23, %s39
    %p41 = scmp.eq.s32.totalorder %s15, 0
    %p42 = por %p40, %p41
    %s44 = sadd.s32 %s43, 1
    %p47 = scmp.eq.s32.totalorder %s9, 1
    %p48 = scmp.ne.s32.totalorder %s43, %s45
    %p49 = scmp.eq.s32.totalorder %s9, 0
    %p50 = por %p48, %p49
    %p51 = scmp.ne.s32.totalorder %s43, %s45
    %p52 = scmp.eq.s32.totalorder %s14, 1
    %p53 = por %p51, %p52
    %p54 = scmp.ne.s32.totalorder %s45, %s46
    %p55 = scmp.eq.s32.totalorder %s14, 0
    %p56 = por %p54, %p55
    %p57 = scmp.ne.s32.totalorder %s45, %s46
    %p58 = scmp.eq.s32.totalorder %s15, 1
    %p59 = por %p57, %p58
    %p61 = scmp.ne.s32.totalorder %s46, %s60
    %p62 = scmp.eq.s32.totalorder %s15, 0
    %p63 = por %p61, %p62
    %s65 = sadd.s32 %s64, 1
    %p68 = scmp.eq.s32.totalorder %s9, 1
    %p69 = scmp.ne.s32.totalorder %s64, %s66
    %p70 = scmp.eq.s32.totalorder %s9, 0
    %p71 = por %p69, %p70
    %p72 = scmp.ne.s32.totalorder %s64, %s66
    %p73 = scmp.eq.s32.totalorder %s14, 1
    %p74 = por %p72, %p73
    %p75 = scmp.ne.s32.totalorder %s66, %s67
    %p76 = scmp.eq.s32.totalorder %s14, 0
    %p77 = por %p75, %p76
    %p78 = scmp.ne.s32.totalorder %s66, %s67
    %p79 = scmp.eq.s32.totalorder %s15, 1
    %p80 = por %p78, %p79
    %p82 = scmp.ne.s32.totalorder %s67, %s81
    %p83 = scmp.eq.s32.totalorder %s15, 0
    %p84 = por %p82, %p83
    %s85 = ssub.s32 %s9, %s16
    %p86 = scmp.eq.s32.totalorder %s85, 0
    %s88 = sadd.s32 %s87, 1
    %s89 = scalar_select %p86, %s87, %s88
    %p92 = pneg %p86
    %p93 = scmp.eq.s32.totalorder %s9, 1
    %p94 = por %p92, %p93
    %p95 = scmp.ne.s32.totalorder %s87, %s90
    %p96 = scmp.eq.s32.totalorder %s9, 0
    %p97 = por %p95, %p96
    %p98 = scmp.ne.s32.totalorder %s87, %s90
    %p99 = scmp.eq.s32.totalorder %s14, 1
    %p100 = por %p98, %p99
    %p101 = scmp.ne.s32.totalorder %s90, %s91
    %p102 = scmp.eq.s32.totalorder %s14, 0
    %p103 = por %p101, %p102
    %p104 = scmp.ne.s32.totalorder %s90, %s91
    %p105 = scmp.eq.s32.totalorder %s15, 1
    %p106 = por %p104, %p105
    %p108 = scmp.ne.s32.totalorder %s91, %s107
    %p109 = scmp.eq.s32.totalorder %s15, 0
    %p110 = por %p108, %p109
    %p111 = scmp.le.s32.totalorder 1, %s9
    %p112 = scmp.lt.s32.totalorder %s9, 3
    %p113 = pnand %p111, %p112
    %p114 = pneg %p113
    // Predicated region
    $region9: #{encoder_forward.4} parent=5 // pred_check
      _
    $region10: #{encoder_forward.4} parent=5 // pred_check_branch
      %116 = sbr.rel (%p113) target = $region12
    $region11: #{encoder_forward.4} parent=5 // pred_region
      %s117 = ssub.s32 %s9, 1
      // Predicated region
      $region13: #{encoder_forward.4} parent=11 // pred_check
        %p118 = pneg %p56
      $region14: #{encoder_forward.4} parent=11 // pred_check_branch
        %120 = sbr.rel (%p118) target = $region16
      $region15: #{encoder_forward.4} parent=11 // pred_region
        _
      $region16: #{encoder_forward.4} parent=11 // pred_fallthru
        _
      // Predicated region
      $region17: #{encoder_forward.4} parent=11 // pred_check
        %p121 = pneg %p77
      $region18: #{encoder_forward.4} parent=11 // pred_check_branch
        %123 = sbr.rel (%p121) target = $region20
      $region19: #{encoder_forward.4} parent=11 // pred_region
        _
      $region20: #{encoder_forward.4} parent=11 // pred_fallthru
        _
    $region12: #{encoder_forward.4} parent=5 // pred_fallthru
      _
    %p124 = scmp.lt.s32.totalorder %s9, 2
    // Predicated region
    $region21: #{encoder_forward.4} parent=5 // pred_check
      %p125 = pneg %p124
    $region22: #{encoder_forward.4} parent=5 // pred_check_branch
      %127 = sbr.rel (%p125) target = $region24
    $region23: #{encoder_forward.4} parent=5 // pred_region
      // Predicated region
      $region25: #{encoder_forward.4} parent=23 // pred_check
        %p128 = pneg %p29
      $region26: #{encoder_forward.4} parent=23 // pred_check_branch
        %130 = sbr.rel (%p128) target = $region28
      $region27: #{encoder_forward.4} parent=23 // pred_region
        %p131 = scmp.lt.s32.totalorder %s9, 1
        %s132 = scalar_select %p131, %s9, 1
        %s133 = smul.addr %s132, 8
        %s134 = smul.addr %s133, 4
        %s135 = scalar_lea.vmem %s0, %s134
      $region28: #{encoder_forward.4} parent=23 // pred_fallthru
        _
    $region24: #{encoder_forward.4} parent=5 // pred_fallthru
      _
    %p136 = scmp.le.s32.totalorder 1, %s9
    %p137 = scmp.lt.s32.totalorder %s9, 3
    %p138 = pnand %p136, %p137
    %p139 = pneg %p138
    // Predicated region
    $region29: #{encoder_forward.4} parent=5 // pred_check
      _
    $region30: #{encoder_forward.4} parent=5 // pred_check_branch
      %141 = sbr.rel (%p138) target = $region32
    $region31: #{encoder_forward.4} parent=5 // pred_region
      %s142 = ssub.s32 %s9, 1
      %p143 = scmp.lt.s32.totalorder %s14, 1
      %s144 = scalar_select %p143, %s14, 1
      %s145 = smul.addr %s144, 8
      %s146 = smul.addr %s145, 4
      %s147 = scalar_lea.vmem %s0, %s146
      %p148 = pneg %p35
      %p149 = pneg %p32
      %p150 = pneg %p56
      %p151 = pneg %p53
      %p152 = pneg %p77
      %p153 = pneg %p74
      %p154 = pneg %p103
      %p155 = pneg %p100
      %p156 = scmp.lt.s32.totalorder %s14, 1
      %s157 = scalar_select %p156, %s14, 1
      %s158 = smul.addr %s157, 4
      %s159 = smul.addr %s158, 4
      %s160 = scalar_lea.vmem %s3, %s159
      %p161 = scmp.lt.s32.totalorder %s14, 1
      %s162 = scalar_select %p161, %s14, 1
      %s163 = smul.addr %s162, 8
      %s164 = smul.addr %s163, 4
      %s165 = scalar_lea.vmem %s0, %s164
      %p166 = scmp.lt.s32.totalorder %s14, 1
      %s167 = scalar_select %p166, %s14, 1
      %s168 = smul.addr %s167, 4
      %s169 = smul.addr %s168, 4
      %s170 = scalar_lea.vmem %s3, %s169
      %v172 = vld [vmem:[%s165] sm:$0xf]
      %v173 = vld [vmem:[%s165 + $0x4] sm:$0xf]
      %v174 = vld [vmem:[%s165 + $0x8] sm:$0xf]
      %v175 = vld [vmem:[%s165 + $0xc] sm:$0xf]
      %v176 = vld [vmem:[%s165 + $0x10] sm:$0xf]
      %v177 = vld [vmem:[%s165 + $0x14] sm:$0xf]
      %v178 = vld [vmem:[%s165 + $0x18] sm:$0xf]
      %v179 = vld [vmem:[%s165 + $0x1c] sm:$0xf]
      %v188 = vunpack.c.l.b16 %v172
      %v189 = vunpack.c.l.b16 %v173
      %v190 = vunpack.c.l.b16 %v174
      %v191 = vunpack.c.l.b16 %v175
      %v192 = vunpack.c.l.b16 %v176
      %v193 = vunpack.c.l.b16 %v177
      %v194 = vunpack.c.l.b16 %v178
      %v195 = vunpack.c.l.b16 %v179
      %v196 = vpack.c.b16 %v189, %v188
      %v197 = vpack.c.b16 %v191, %v190
      %v198 = vpack.c.b16 %v193, %v192
      %v199 = vpack.c.b16 %v195, %v194
      %204 = vrot.lane.b32.xlu0 %v196, 127
      %v205 = vpop.permute.xlu0 %204
      %206 = vrot.lane.b32.xlu0 %v197, 127
      %v207 = vpop.permute.xlu0 %206
      %208 = vrot.lane.b32.xlu0 %v198, 127
      %v209 = vpop.permute.xlu0 %208
      %210 = vrot.lane.b32.xlu0 %v199, 127
      %v211 = vpop.permute.xlu0 %210
      %216 = vrot.lane.b32.xlu0 %v196, 123
      %v217 = vpop.permute.xlu0 %216
      %218 = vrot.lane.b32.xlu0 %v197, 123
      %v219 = vpop.permute.xlu0 %218
      %220 = vrot.lane.b32.xlu0 %v198, 123
      %v221 = vpop.permute.xlu0 %220
      %222 = vrot.lane.b32.xlu0 %v199, 123
      %v223 = vpop.permute.xlu0 %222
      %228 = vrot.lane.b32.xlu0 %v196, 122
      %v229 = vpop.permute.xlu0 %228
      %230 = vrot.lane.b32.xlu0 %v197, 122
      %v231 = vpop.permute.xlu0 %230
      %232 = vrot.lane.b32.xlu0 %v198, 122
      %v233 = vpop.permute.xlu0 %232
      %234 = vrot.lane.b32.xlu0 %v199, 122
      %v235 = vpop.permute.xlu0 %234
      %v240 = vld [vmem:[%s1] sm:$0xff]
      %v241 = vld [vmem:[%s1 + $0x8] sm:$0xff]
      %v242 = vld [vmem:[%s1 + $0x10] sm:$0xff]
      %v243 = vld [vmem:[%s1 + $0x18] sm:$0xff]
      %v244 = vld [vmem:[%s2] sm:$0xff]
      %v245 = vld [vmem:[%s2 + $0x8] sm:$0xff]
      %v246 = vld [vmem:[%s2 + $0x10] sm:$0xff]
      %v247 = vld [vmem:[%s2 + $0x18] sm:$0xff]
      %249 = vset.pattern.permute.xlu0 0
      %250 = vperm.xlu0 %249, %v244
      %v251 = vpop.permute.xlu0 %250
      %254 = vset.pattern.permute.xlu0 0
      %255 = vperm.xlu0 %254, %v245
      %v256 = vpop.permute.xlu0 %255
      %259 = vset.pattern.permute.xlu0 0
      %260 = vperm.xlu0 %259, %v246
      %v261 = vpop.permute.xlu0 %260
      %264 = vset.pattern.permute.xlu0 0
      %265 = vperm.xlu0 %264, %v247
      %v266 = vpop.permute.xlu0 %265
      %v272 = vunpack.c.l.b16 %v240
      %v273 = vunpack.c.h.b16 %v240
      %v274 = vunpack.c.l.b16 %v241
      %v275 = vunpack.c.h.b16 %v241
      %v276 = vunpack.c.l.b16 %v242
      %v277 = vunpack.c.h.b16 %v242
      %v278 = vunpack.c.l.b16 %v243
      %v279 = vunpack.c.h.b16 %v243
      %v280 = vpack.c.b16 %v274, %v272
      %v281 = vpack.c.b16 %v275, %v273
      %v282 = vpack.c.b16 %v278, %v276
      %v283 = vpack.c.b16 %v279, %v277
      %288 = vmatprep.subr.bf16.mxu0 0
      %289 = vmatpush1.bf16.msra.mxu0 %v196
      %290 = vmatprep.subr.bf16.mxu0 0
      %291 = vmatpush1.bf16.msra.mxu0 %v197
      %292 = vmatprep.subr.bf16.mxu0 0
      %293 = vmatpush1.bf16.msra.mxu0 %v198
      %294 = vmatprep.subr.bf16.mxu0 0
      %295 = vmatpush1.bf16.msra.mxu0 %v199
      %296 = vmatprep.subr.bf16.mxu0 0
      %297 = vmatpush1.bf16.msra.mxu0 %v205
      %298 = vmatprep.subr.bf16.mxu0 0
      %299 = vmatpush1.bf16.msra.mxu0 %v207
      %300 = vmatprep.subr.bf16.mxu0 0
      %301 = vmatpush1.bf16.msra.mxu0 %v209
      %302 = vmatprep.subr.bf16.mxu0 0
      %303 = vmatpush1.bf16.msra.mxu0 %v211
      %304 = vmatprep.subr.bf16.mxu0 0
      %305 = vmatpush1.bf16.msra.mxu0 %v217
      %306 = vmatprep.subr.bf16.mxu0 0
      %307 = vmatpush1.bf16.msra.mxu0 %v219
      %308 = vmatprep.subr.bf16.mxu0 0
      %309 = vmatpush1.bf16.msra.mxu0 %v221
      %310 = vmatprep.subr.bf16.mxu0 0
      %311 = vmatpush1.bf16.msra.mxu0 %v223
      %312 = vmatprep.subr.bf16.mxu0 0
      %313 = vmatpush1.bf16.msra.mxu0 %v229
      %314 = vmatprep.subr.bf16.mxu0 0
      %315 = vmatpush1.bf16.msra.mxu0 %v231
      %316 = vmatprep.subr.bf16.mxu0 0
      %317 = vmatpush1.bf16.msra.mxu0 %v233
      %318 = vmatprep.subr.bf16.mxu0 0
      %319 = vmatpush1.bf16.msra.mxu0 %v235
      %320 = vmatprep.mubr.bf16.mxu0 %v281
      %321 = vmatmul.mubr.bf16.gmra.mrb[0].mxu0 %v280
      %v322 = vpop.f32.mrb[0].mxu0
      %v323 = vadd.f32 %v251, %v322
      %v324 = vpop.f32.mrb[0].mxu0
      %v325 = vpop.f32.mrb[0].mxu0
      %v326 = vadd.f32 %v256, %v325
      %v327 = vpop.f32.mrb[0].mxu0
      %328 = vmatprep.mubr.bf16.mxu0 %v283
      %329 = vmatmul.mubr.bf16.gmra.mrb[0].mxu0 %v282
      %v330 = vpop.f32.mrb[0].mxu0
      %v331 = vadd.f32 %v261, %v330
      %v332 = vpop.f32.mrb[0].mxu0
      %v333 = vpop.f32.mrb[0].mxu0
      %v334 = vadd.f32 %v266, %v333
      %v335 = vpop.f32.mrb[0].mxu0
      %336 = vdwg.mxu0
      %v337 = vmax.f32 %v323, 0.0
      %v338 = vmax.f32 %v326, 0.0
      %v339 = vmax.f32 %v331, 0.0
      %v340 = vmax.f32 %v334, 0.0
      %v341 = vpack.c.bf16 %v338, %v337
      %v342 = vpack.c.bf16 %v340, %v339
      %v345 = vunpack.c.l.b16 %v341
      %v346 = vunpack.c.h.b16 %v341
      %v347 = vunpack.c.l.b16 %v342
      %v348 = vunpack.c.h.b16 %v342
      %v349 = vpack.c.b16 %v345, %v345
      %v350 = vpack.c.b16 %v346, %v346
      %v351 = vpack.c.b16 %v347, %v347
      %v352 = vpack.c.b16 %v348, %v348
      %vm357 = vcmask 158720
      %358 = vst.msk [vmem:[%s170] sm:$0xf] %vm357, %v349
      %359 = vst.msk [vmem:[%s170 + $0x4] sm:$0xf] %vm357, %v350
      %360 = vst.msk [vmem:[%s170 + $0x8] sm:$0xf] %vm357, %v351
      %361 = vst.msk [vmem:[%s170 + $0xc] sm:$0xf] %vm357, %v352
      %p362 = scmp.lt.s32.totalorder %s14, 1
      %s363 = scalar_select %p362, %s14, 1
      %s364 = smul.addr %s363, 4
      %s365 = smul.addr %s364, 4
      %s366 = scalar_lea.vmem %s3, %s365
      // Predicated region
      $region33: #{encoder_forward.4} parent=31 // pred_check
        %p367 = pneg %p100
      $region34: #{encoder_forward.4} parent=31 // pred_check_branch
        %369 = sbr.rel (%p367) target = $region36
      $region35: #{encoder_forward.4} parent=31 // pred_region
        _
      $region36: #{encoder_forward.4} parent=31 // pred_fallthru
        _
    $region32: #{encoder_forward.4} parent=5 // pred_fallthru
      _
    %p370 = scmp.le.s32.totalorder 2, %s9
    // Predicated region
    $region37: #{encoder_forward.4} parent=5 // pred_check
      %p371 = pneg %p370
    $region38: #{encoder_forward.4} parent=5 // pred_check_branch
      %373 = sbr.rel (%p371) target = $region40
    $region39: #{encoder_forward.4} parent=5 // pred_region
      %s374 = ssub.s32 %s9, 2
      // Predicated region
      $region41: #{encoder_forward.4} parent=39 // pred_check
        %p375 = pneg %p106
      $region42: #{encoder_forward.4} parent=39 // pred_check_branch
        %377 = sbr.rel (%p375) target = $region44
      $region43: #{encoder_forward.4} parent=39 // pred_region
        %p378 = scmp.lt.s32.totalorder %s15, 1
        %s379 = scalar_select %p378, %s15, 1
        %s380 = smul.addr %s379, 4
        %s381 = smul.addr %s380, 4
        %s382 = scalar_lea.vmem %s3, %s381
      $region44: #{encoder_forward.4} parent=39 // pred_fallthru
        _
    $region40: #{encoder_forward.4} parent=5 // pred_fallthru
      _
  $region6: #{encoder_forward.4} parent=0 // loop_footer
    %s13 = sadd.s32 1, %s9
  $region7: #{encoder_forward.4} parent=0 // loop_footer_branch
    %8 = sbr.rel target = $region3
  $region8: #{encoder_forward.4} parent=0 // loop_exit
    _

// kernel: encoder_forward.5
$region0: #{encoder_forward.5}
  #allocation0 [shape = 'u32[]', space=smem, size = 0x4, offset = 0x4, fixed_abs, tag = 'smem constant byte address 0x4 - core index']
  #allocation1 [shape = 'u32[144,128]{1,0:T(1,128)}', space=vmem, size = 0x12000, scoped, tag = 'internal scratch']
  #allocation2 [shape = 'f32[32,38]{1,0:T(8,128)}', space=vmem, size = 0x4000, scoped, tag = 'scratch operand']
  %s0 = inlined_call_operand.vmem [shape: bf16[2,32,38], index: 0, kind: input, shape index: {}]
  %s1 = inlined_call_operand.vmem [shape: bf16[32,288], index: 1, kind: input, shape index: {}]
  %s2 = inlined_call_operand.vmem [shape: f32[32,1], index: 2, kind: input, shape index: {}]
  %s3 = inlined_call_operand.vmem [shape: bf16[16,288], index: 3, kind: input, shape index: {}]
  %s4 = inlined_call_operand.vmem [shape: f32[16,1], index: 4, kind: input, shape index: {}]
  %s5 = inlined_call_operand.vmem [shape: bf16[32,16], index: 5, kind: input, shape index: {}]
  %s6 = inlined_call_operand.vmem [shape: f32[32,1], index: 6, kind: input, shape index: {}]
  %s7 = inlined_call_operand.vmem [shape: bf16[16,288], index: 7, kind: input, shape index: {}]
  %s8 = inlined_call_operand.vmem [shape: f32[16,1], index: 8, kind: input, shape index: {}]
  %s9 = inlined_call_operand.vmem [shape: bf16[32,16], index: 9, kind: input, shape index: {}]
  %s10 = inlined_call_operand.vmem [shape: f32[32,1], index: 10, kind: input, shape index: {}]
  %s11 = inlined_call_operand.vmem [shape: bf16[8,32], index: 11, kind: input, shape index: {}]
  %s12 = inlined_call_operand.vmem [shape: f32[8,1], index: 12, kind: input, shape index: {}]
  %s13 = inlined_call_operand.vmem [shape: f32[2,8,24], index: 13, kind: output, shape index: {}]
  %s14 = sld [smem:[#allocation0]]
  $region85: #{encoder_forward.5} parent=0
    _
  %s16 = ssub.s32 1, %s14
  %s17 = scalar_select 0, %s16, %s14
  loop: start=0, step=1, limit=4
  $region2: #{encoder_forward.5} parent=0 // loop_pre_header
    _
  $region3: #{encoder_forward.5} parent=0 // loop_header
    %s19 = sphi 0, %s23
    %p20 = scmp.ge.s32.totalorder %s19, 4
    %s29 = sphi 0, %s31
    %s32 = sphi 0, %s29
    %s33 = sphi 0, %s32
    %s49 = sphi 0, %s33
    %s53 = sphi 0, %s53
    %s55 = sphi 0, %s53
    %s56 = sphi 0, %s55
    %s70 = sphi 0, %s56
    %s74 = sphi 0, %s74
    %s76 = sphi 0, %s74
    %s77 = sphi 0, %s76
    %s91 = sphi 0, %s77
    %s95 = sphi 0, %s95
    %s97 = sphi 0, %s95
    %s98 = sphi 0, %s97
    %s112 = sphi 0, %s98
    %s116 = sphi 0, %s116
    %s118 = sphi 0, %s116
    %s119 = sphi 0, %s118
    %s133 = sphi 0, %s119
    %s137 = sphi 0, %s137
    %s139 = sphi 0, %s137
    %s140 = sphi 0, %s139
    %s154 = sphi 0, %s140
    %s158 = sphi 0, %s158
    %s160 = sphi 0, %s158
    %s161 = sphi 0, %s160
    %s175 = sphi 0, %s161
    %s179 = sphi 0, %s179
    %s181 = sphi 0, %s179
    %s182 = sphi 0, %s181
    %s196 = sphi 0, %s182
    %s200 = sphi 0, %s200
    %s202 = sphi 0, %s200
    %s203 = sphi 0, %s202
    %s217 = sphi 0, %s203
    %s221 = sphi 0, %s221
    %s223 = sphi 0, %s221
    %s224 = sphi 0, %s223
    %s238 = sphi 0, %s224
    %s242 = sphi 0, %s242
    %s244 = sphi 0, %s242
    %s245 = sphi 0, %s244
    %s259 = sphi 0, %s245
    %s263 = sphi 0, %s263
    %s265 = sphi 0, %s263
    %s266 = sphi 0, %s265
    %s280 = sphi 0, %s266
    %s284 = sphi 0, %s284
    %s286 = sphi 0, %s284
    %s287 = sphi 0, %s286
    %s301 = sphi 0, %s287
    %s307 = sphi 0, %s309
    %s310 = sphi 0, %s307
    %s311 = sphi 0, %s310
    %s327 = sphi 0, %s311
  $region4: #{encoder_forward.5} parent=0 // loop_header_branch
    %22 = sbr.rel (%p20) target = $region8
  $region5: #{encoder_forward.5} parent=0 // loop_body
    %s24 = ssub.s32 %s19, 1
    %s25 = ssub.s32 %s19, 2
    %s26 = sadd.s32 %s19, 1
    %s27 = ssub.s32 %s19, %s26
    %p28 = scmp.eq.s32.totalorder %s27, 0
    %s30 = sadd.s32 %s29, 1
    %s31 = scalar_select %p28, %s29, %s30
    %p34 = pneg %p28
    %p35 = scmp.eq.s32.totalorder %s19, 1
    %p36 = por %p34, %p35
    %p37 = scmp.ne.s32.totalorder %s29, %s32
    %p38 = scmp.eq.s32.totalorder %s19, 0
    %p39 = por %p37, %p38
    %p40 = scmp.ne.s32.totalorder %s29, %s32
    %p41 = scmp.eq.s32.totalorder %s24, 1
    %p42 = por %p40, %p41
    %p43 = scmp.ne.s32.totalorder %s32, %s33
    %p44 = scmp.eq.s32.totalorder %s24, 0
    %p45 = por %p43, %p44
    %p46 = scmp.ne.s32.totalorder %s32, %s33
    %p47 = scmp.eq.s32.totalorder %s25, 1
    %p48 = por %p46, %p47
    %p50 = scmp.ne.s32.totalorder %s33, %s49
    %p51 = scmp.eq.s32.totalorder %s25, 0
    %p52 = por %p50, %p51
    %s54 = sadd.s32 %s53, 1
    %p57 = scmp.eq.s32.totalorder %s19, 1
    %p58 = scmp.ne.s32.totalorder %s53, %s55
    %p59 = scmp.eq.s32.totalorder %s19, 0
    %p60 = por %p58, %p59
    %p61 = scmp.ne.s32.totalorder %s53, %s55
    %p62 = scmp.eq.s32.totalorder %s24, 1
    %p63 = por %p61, %p62
    %p64 = scmp.ne.s32.totalorder %s55, %s56
    %p65 = scmp.eq.s32.totalorder %s24, 0
    %p66 = por %p64, %p65
    %p67 = scmp.ne.s32.totalorder %s55, %s56
    %p68 = scmp.eq.s32.totalorder %s25, 1
    %p69 = por %p67, %p68
    %p71 = scmp.ne.s32.totalorder %s56, %s70
    %p72 = scmp.eq.s32.totalorder %s25, 0
    %p73 = por %p71, %p72
    %s75 = sadd.s32 %s74, 1
    %p78 = scmp.eq.s32.totalorder %s19, 1
    %p79 = scmp.ne.s32.totalorder %s74, %s76
    %p80 = scmp.eq.s32.totalorder %s19, 0
    %p81 = por %p79, %p80
    %p82 = scmp.ne.s32.totalorder %s74, %s76
    %p83 = scmp.eq.s32.totalorder %s24, 1
    %p84 = por %p82, %p83
    %p85 = scmp.ne.s32.totalorder %s76, %s77
    %p86 = scmp.eq.s32.totalorder %s24, 0
    %p87 = por %p85, %p86
    %p88 = scmp.ne.s32.totalorder %s76, %s77
    %p89 = scmp.eq.s32.totalorder %s25, 1
    %p90 = por %p88, %p89
    %p92 = scmp.ne.s32.totalorder %s77, %s91
    %p93 = scmp.eq.s32.totalorder %s25, 0
    %p94 = por %p92, %p93
    %s96 = sadd.s32 %s95, 1
    %p99 = scmp.eq.s32.totalorder %s19, 1
    %p100 = scmp.ne.s32.totalorder %s95, %s97
    %p101 = scmp.eq.s32.totalorder %s19, 0
    %p102 = por %p100, %p101
    %p103 = scmp.ne.s32.totalorder %s95, %s97
    %p104 = scmp.eq.s32.totalorder %s24, 1
    %p105 = por %p103, %p104
    %p106 = scmp.ne.s32.totalorder %s97, %s98
    %p107 = scmp.eq.s32.totalorder %s24, 0
    %p108 = por %p106, %p107
    %p109 = scmp.ne.s32.totalorder %s97, %s98
    %p110 = scmp.eq.s32.totalorder %s25, 1
    %p111 = por %p109, %p110
    %p113 = scmp.ne.s32.totalorder %s98, %s112
    %p114 = scmp.eq.s32.totalorder %s25, 0
    %p115 = por %p113, %p114
    %s117 = sadd.s32 %s116, 1
    %p120 = scmp.eq.s32.totalorder %s19, 1
    %p121 = scmp.ne.s32.totalorder %s116, %s118
    %p122 = scmp.eq.s32.totalorder %s19, 0
    %p123 = por %p121, %p122
    %p124 = scmp.ne.s32.totalorder %s116, %s118
    %p125 = scmp.eq.s32.totalorder %s24, 1
    %p126 = por %p124, %p125
    %p127 = scmp.ne.s32.totalorder %s118, %s119
    %p128 = scmp.eq.s32.totalorder %s24, 0
    %p129 = por %p127, %p128
    %p130 = scmp.ne.s32.totalorder %s118, %s119
    %p131 = scmp.eq.s32.totalorder %s25, 1
    %p132 = por %p130, %p131
    %p134 = scmp.ne.s32.totalorder %s119, %s133
    %p135 = scmp.eq.s32.totalorder %s25, 0
    %p136 = por %p134, %p135
    %s138 = sadd.s32 %s137, 1
    %p141 = scmp.eq.s32.totalorder %s19, 1
    %p142 = scmp.ne.s32.totalorder %s137, %s139
    %p143 = scmp.eq.s32.totalorder %s19, 0
    %p144 = por %p142, %p143
    %p145 = scmp.ne.s32.totalorder %s137, %s139
    %p146 = scmp.eq.s32.totalorder %s24, 1
    %p147 = por %p145, %p146
    %p148 = scmp.ne.s32.totalorder %s139, %s140
    %p149 = scmp.eq.s32.totalorder %s24, 0
    %p150 = por %p148, %p149
    %p151 = scmp.ne.s32.totalorder %s139, %s140
    %p152 = scmp.eq.s32.totalorder %s25, 1
    %p153 = por %p151, %p152
    %p155 = scmp.ne.s32.totalorder %s140, %s154
    %p156 = scmp.eq.s32.totalorder %s25, 0
    %p157 = por %p155, %p156
    %s159 = sadd.s32 %s158, 1
    %p162 = scmp.eq.s32.totalorder %s19, 1
    %p163 = scmp.ne.s32.totalorder %s158, %s160
    %p164 = scmp.eq.s32.totalorder %s19, 0
    %p165 = por %p163, %p164
    %p166 = scmp.ne.s32.totalorder %s158, %s160
    %p167 = scmp.eq.s32.totalorder %s24, 1
    %p168 = por %p166, %p167
    %p169 = scmp.ne.s32.totalorder %s160, %s161
    %p170 = scmp.eq.s32.totalorder %s24, 0
    %p171 = por %p169, %p170
    %p172 = scmp.ne.s32.totalorder %s160, %s161
    %p173 = scmp.eq.s32.totalorder %s25, 1
    %p174 = por %p172, %p173
    %p176 = scmp.ne.s32.totalorder %s161, %s175
    %p177 = scmp.eq.s32.totalorder %s25, 0
    %p178 = por %p176, %p177
    %s180 = sadd.s32 %s179, 1
    %p183 = scmp.eq.s32.totalorder %s19, 1
    %p184 = scmp.ne.s32.totalorder %s179, %s181
    %p185 = scmp.eq.s32.totalorder %s19, 0
    %p186 = por %p184, %p185
    %p187 = scmp.ne.s32.totalorder %s179, %s181
    %p188 = scmp.eq.s32.totalorder %s24, 1
    %p189 = por %p187, %p188
    %p190 = scmp.ne.s32.totalorder %s181, %s182
    %p191 = scmp.eq.s32.totalorder %s24, 0
    %p192 = por %p190, %p191
    %p193 = scmp.ne.s32.totalorder %s181, %s182
    %p194 = scmp.eq.s32.totalorder %s25, 1
    %p195 = por %p193, %p194
    %p197 = scmp.ne.s32.totalorder %s182, %s196
    %p198 = scmp.eq.s32.totalorder %s25, 0
    %p199 = por %p197, %p198
    %s201 = sadd.s32 %s200, 1
    %p204 = scmp.eq.s32.totalorder %s19, 1
    %p205 = scmp.ne.s32.totalorder %s200, %s202
    %p206 = scmp.eq.s32.totalorder %s19, 0
    %p207 = por %p205, %p206
    %p208 = scmp.ne.s32.totalorder %s200, %s202
    %p209 = scmp.eq.s32.totalorder %s24, 1
    %p210 = por %p208, %p209
    %p211 = scmp.ne.s32.totalorder %s202, %s203
    %p212 = scmp.eq.s32.totalorder %s24, 0
    %p213 = por %p211, %p212
    %p214 = scmp.ne.s32.totalorder %s202, %s203
    %p215 = scmp.eq.s32.totalorder %s25, 1
    %p216 = por %p214, %p215
    %p218 = scmp.ne.s32.totalorder %s203, %s217
    %p219 = scmp.eq.s32.totalorder %s25, 0
    %p220 = por %p218, %p219
    %s222 = sadd.s32 %s221, 1
    %p225 = scmp.eq.s32.totalorder %s19, 1
    %p226 = scmp.ne.s32.totalorder %s221, %s223
    %p227 = scmp.eq.s32.totalorder %s19, 0
    %p228 = por %p226, %p227
    %p229 = scmp.ne.s32.totalorder %s221, %s223
    %p230 = scmp.eq.s32.totalorder %s24, 1
    %p231 = por %p229, %p230
    %p232 = scmp.ne.s32.totalorder %s223, %s224
    %p233 = scmp.eq.s32.totalorder %s24, 0
    %p234 = por %p232, %p233
    %p235 = scmp.ne.s32.totalorder %s223, %s224
    %p236 = scmp.eq.s32.totalorder %s25, 1
    %p237 = por %p235, %p236
    %p239 = scmp.ne.s32.totalorder %s224, %s238
    %p240 = scmp.eq.s32.totalorder %s25, 0
    %p241 = por %p239, %p240
    %s243 = sadd.s32 %s242, 1
    %p246 = scmp.eq.s32.totalorder %s19, 1
    %p247 = scmp.ne.s32.totalorder %s242, %s244
    %p248 = scmp.eq.s32.totalorder %s19, 0
    %p249 = por %p247, %p248
    %p250 = scmp.ne.s32.totalorder %s242, %s244
    %p251 = scmp.eq.s32.totalorder %s24, 1
    %p252 = por %p250, %p251
    %p253 = scmp.ne.s32.totalorder %s244, %s245
    %p254 = scmp.eq.s32.totalorder %s24, 0
    %p255 = por %p253, %p254
    %p256 = scmp.ne.s32.totalorder %s244, %s245
    %p257 = scmp.eq.s32.totalorder %s25, 1
    %p258 = por %p256, %p257
    %p260 = scmp.ne.s32.totalorder %s245, %s259
    %p261 = scmp.eq.s32.totalorder %s25, 0
    %p262 = por %p260, %p261
    %s264 = sadd.s32 %s263, 1
    %p267 = scmp.eq.s32.totalorder %s19, 1
    %p268 = scmp.ne.s32.totalorder %s263, %s265
    %p269 = scmp.eq.s32.totalorder %s19, 0
    %p270 = por %p268, %p269
    %p271 = scmp.ne.s32.totalorder %s263, %s265
    %p272 = scmp.eq.s32.totalorder %s24, 1
    %p273 = por %p271, %p272
    %p274 = scmp.ne.s32.totalorder %s265, %s266
    %p275 = scmp.eq.s32.totalorder %s24, 0
    %p276 = por %p274, %p275
    %p277 = scmp.ne.s32.totalorder %s265, %s266
    %p278 = scmp.eq.s32.totalorder %s25, 1
    %p279 = por %p277, %p278
    %p281 = scmp.ne.s32.totalorder %s266, %s280
    %p282 = scmp.eq.s32.totalorder %s25, 0
    %p283 = por %p281, %p282
    %s285 = sadd.s32 %s284, 1
    %p288 = scmp.eq.s32.totalorder %s19, 1
    %p289 = scmp.ne.s32.totalorder %s284, %s286
    %p290 = scmp.eq.s32.totalorder %s19, 0
    %p291 = por %p289, %p290
    %p292 = scmp.ne.s32.totalorder %s284, %s286
    %p293 = scmp.eq.s32.totalorder %s24, 1
    %p294 = por %p292, %p293
    %p295 = scmp.ne.s32.totalorder %s286, %s287
    %p296 = scmp.eq.s32.totalorder %s24, 0
    %p297 = por %p295, %p296
    %p298 = scmp.ne.s32.totalorder %s286, %s287
    %p299 = scmp.eq.s32.totalorder %s25, 1
    %p300 = por %p298, %p299
    %p302 = scmp.ne.s32.totalorder %s287, %s301
    %p303 = scmp.eq.s32.totalorder %s25, 0
    %p304 = por %p302, %p303
    %s305 = ssub.s32 %s19, %s26
    %p306 = scmp.eq.s32.totalorder %s305, 0
    %s308 = sadd.s32 %s307, 1
    %s309 = scalar_select %p306, %s307, %s308
    %p312 = pneg %p306
    %p313 = scmp.eq.s32.totalorder %s19, 1
    %p314 = por %p312, %p313
    %p315 = scmp.ne.s32.totalorder %s307, %s310
    %p316 = scmp.eq.s32.totalorder %s19, 0
    %p317 = por %p315, %p316
    %p318 = scmp.ne.s32.totalorder %s307, %s310
    %p319 = scmp.eq.s32.totalorder %s24, 1
    %p320 = por %p318, %p319
    %p321 = scmp.ne.s32.totalorder %s310, %s311
    %p322 = scmp.eq.s32.totalorder %s24, 0
    %p323 = por %p321, %p322
    %p324 = scmp.ne.s32.totalorder %s310, %s311
    %p325 = scmp.eq.s32.totalorder %s25, 1
    %p326 = por %p324, %p325
    %p328 = scmp.ne.s32.totalorder %s311, %s327
    %p329 = scmp.eq.s32.totalorder %s25, 0
    %p330 = por %p328, %p329
    %p331 = scmp.le.s32.totalorder 1, %s19
    %p332 = scmp.lt.s32.totalorder %s19, 3
    %p333 = pnand %p331, %p332
    %p334 = pneg %p333
    // Predicated region
    $region9: #{encoder_forward.5} parent=5 // pred_check
      _
    $region10: #{encoder_forward.5} parent=5 // pred_check_branch
      %336 = sbr.rel (%p333) target = $region12
    $region11: #{encoder_forward.5} parent=5 // pred_region
      %s337 = ssub.s32 %s19, 1
      // Predicated region
      $region13: #{encoder_forward.5} parent=11 // pred_check
        %p338 = pneg %p66
      $region14: #{encoder_forward.5} parent=11 // pred_check_branch
        %340 = sbr.rel (%p338) target = $region16
      $region15: #{encoder_forward.5} parent=11 // pred_region
        _
      $region16: #{encoder_forward.5} parent=11 // pred_fallthru
        _
      // Predicated region
      $region17: #{encoder_forward.5} parent=11 // pred_check
        %p341 = pneg %p87
      $region18: #{encoder_forward.5} parent=11 // pred_check_branch
        %343 = sbr.rel (%p341) target = $region20
      $region19: #{encoder_forward.5} parent=11 // pred_region
        _
      $region20: #{encoder_forward.5} parent=11 // pred_fallthru
        _
      // Predicated region
      $region21: #{encoder_forward.5} parent=11 // pred_check
        %p344 = pneg %p108
      $region22: #{encoder_forward.5} parent=11 // pred_check_branch
        %346 = sbr.rel (%p344) target = $region24
      $region23: #{encoder_forward.5} parent=11 // pred_region
        _
      $region24: #{encoder_forward.5} parent=11 // pred_fallthru
        _
      // Predicated region
      $region25: #{encoder_forward.5} parent=11 // pred_check
        %p347 = pneg %p129
      $region26: #{encoder_forward.5} parent=11 // pred_check_branch
        %349 = sbr.rel (%p347) target = $region28
      $region27: #{encoder_forward.5} parent=11 // pred_region
        _
      $region28: #{encoder_forward.5} parent=11 // pred_fallthru
        _
      // Predicated region
      $region29: #{encoder_forward.5} parent=11 // pred_check
        %p350 = pneg %p150
      $region30: #{encoder_forward.5} parent=11 // pred_check_branch
        %352 = sbr.rel (%p350) target = $region32
      $region31: #{encoder_forward.5} parent=11 // pred_region
        _
      $region32: #{encoder_forward.5} parent=11 // pred_fallthru
        _
      // Predicated region
      $region33: #{encoder_forward.5} parent=11 // pred_check
        %p353 = pneg %p171
      $region34: #{encoder_forward.5} parent=11 // pred_check_branch
        %355 = sbr.rel (%p353) target = $region36
      $region35: #{encoder_forward.5} parent=11 // pred_region
        _
      $region36: #{encoder_forward.5} parent=11 // pred_fallthru
        _
      // Predicated region
      $region37: #{encoder_forward.5} parent=11 // pred_check
        %p356 = pneg %p192
      $region38: #{encoder_forward.5} parent=11 // pred_check_branch
        %358 = sbr.rel (%p356) target = $region40
      $region39: #{encoder_forward.5} parent=11 // pred_region
        _
      $region40: #{encoder_forward.5} parent=11 // pred_fallthru
        _
      // Predicated region
      $region41: #{encoder_forward.5} parent=11 // pred_check
        %p359 = pneg %p213
      $region42: #{encoder_forward.5} parent=11 // pred_check_branch
        %361 = sbr.rel (%p359) target = $region44
      $region43: #{encoder_forward.5} parent=11 // pred_region
        _
      $region44: #{encoder_forward.5} parent=11 // pred_fallthru
        _
      // Predicated region
      $region45: #{encoder_forward.5} parent=11 // pred_check
        %p362 = pneg %p234
      $region46: #{encoder_forward.5} parent=11 // pred_check_branch
        %364 = sbr.rel (%p362) target = $region48
      $region47: #{encoder_forward.5} parent=11 // pred_region
        _
      $region48: #{encoder_forward.5} parent=11 // pred_fallthru
        _
      // Predicated region
      $region49: #{encoder_forward.5} parent=11 // pred_check
        %p365 = pneg %p255
      $region50: #{encoder_forward.5} parent=11 // pred_check_branch
        %367 = sbr.rel (%p365) target = $region52
      $region51: #{encoder_forward.5} parent=11 // pred_region
        _
      $region52: #{encoder_forward.5} parent=11 // pred_fallthru
        _
      // Predicated region
      $region53: #{encoder_forward.5} parent=11 // pred_check
        %p368 = pneg %p276
      $region54: #{encoder_forward.5} parent=11 // pred_check_branch
        %370 = sbr.rel (%p368) target = $region56
      $region55: #{encoder_forward.5} parent=11 // pred_region
        _
      $region56: #{encoder_forward.5} parent=11 // pred_fallthru
        _
      // Predicated region
      $region57: #{encoder_forward.5} parent=11 // pred_check
        %p371 = pneg %p297
      $region58: #{encoder_forward.5} parent=11 // pred_check_branch
        %373 = sbr.rel (%p371) target = $region60
      $region59: #{encoder_forward.5} parent=11 // pred_region
        _
      $region60: #{encoder_forward.5} parent=11 // pred_fallthru
        _
    $region12: #{encoder_forward.5} parent=5 // pred_fallthru
      _
    %p374 = scmp.lt.s32.totalorder %s19, 2
    // Predicated region
    $region61: #{encoder_forward.5} parent=5 // pred_check
      %p375 = pneg %p374
    $region62: #{encoder_forward.5} parent=5 // pred_check_branch
      %377 = sbr.rel (%p375) target = $region64
    $region63: #{encoder_forward.5} parent=5 // pred_region
      // Predicated region
      $region65: #{encoder_forward.5} parent=63 // pred_check
        %p378 = pneg %p39
      $region66: #{encoder_forward.5} parent=63 // pred_check_branch
        %380 = sbr.rel (%p378) target = $region68
      $region67: #{encoder_forward.5} parent=63 // pred_region
        %p381 = scmp.lt.s32.totalorder %s19, 1
        %s382 = scalar_select %p381, %s19, 1
        %s383 = smul.addr %s382, 4
        %s384 = smul.addr %s383, 4
        %s385 = scalar_lea.vmem %s0, %s384
      $region68: #{encoder_forward.5} parent=63 // pred_fallthru
        _
    $region64: #{encoder_forward.5} parent=5 // pred_fallthru
      _
    %p386 = scmp.le.s32.totalorder 1, %s19
    %p387 = scmp.lt.s32.totalorder %s19, 3
    %p388 = pnand %p386, %p387
    %p389 = pneg %p388
    // Predicated region
    $region69: #{encoder_forward.5} parent=5 // pred_check
      _
    $region70: #{encoder_forward.5} parent=5 // pred_check_branch
      %391 = sbr.rel (%p388) target = $region72
    $region71: #{encoder_forward.5} parent=5 // pred_region
      %s392 = ssub.s32 %s19, 1
      %p393 = scmp.lt.s32.totalorder %s24, 1
      %s394 = scalar_select %p393, %s24, 1
      %s395 = smul.addr %s394, 4
      %s396 = smul.addr %s395, 4
      %s397 = scalar_lea.vmem %s0, %s396
      %p398 = pneg %p45
      %p399 = pneg %p42
      %p400 = pneg %p66
      %p401 = pneg %p63
      %p402 = pneg %p87
      %p403 = pneg %p84
      %p404 = pneg %p108
      %p405 = pneg %p105
      %p406 = pneg %p129
      %p407 = pneg %p126
      %p408 = pneg %p150
      %p409 = pneg %p147
      %p410 = pneg %p171
      %p411 = pneg %p168
      %p412 = pneg %p192
      %p413 = pneg %p189
      %p414 = pneg %p213
      %p415 = pneg %p210
      %p416 = pneg %p234
      %p417 = pneg %p231
      %p418 = pneg %p255
      %p419 = pneg %p252
      %p420 = pneg %p276
      %p421 = pneg %p273
      %p422 = pneg %p297
      %p423 = pneg %p294
      %p424 = pneg %p323
      %p425 = pneg %p320
      %p426 = scmp.lt.s32.totalorder %s24, 1
      %s427 = scalar_select %p426, %s24, 1
      %s428 = smul.addr %s427, 8
      %s429 = scalar_lea.vmem %s13, %s428
      %p430 = scmp.lt.s32.totalorder %s24, 1
      %s431 = scalar_select %p430, %s24, 1
      %s432 = smul.addr %s431, 4
      %s433 = smul.addr %s432, 4
      %s434 = scalar_lea.vmem %s0, %s433
      %p435 = scmp.lt.s32.totalorder %s24, 1
      %s436 = scalar_select %p435, %s24, 1
      %s437 = smul.addr %s436, 8
      %s438 = scalar_lea.vmem %s13, %s437
      %v440 = vlaneseq
      %v441 = vand.u32 %v440, 127
      %vm442 = vcmp.lt.s32.totalorder %v441, 0
      %v443 = vsub.s32 0, %v441
      %v444 = vsel %vm442, %v443, %v441
      %v445 = vmul.u32.u64.compose %v444, 2863311531
      %v446 = vextract.low.u32 %v445
      %v447 = vextract.high.u32 %v445
      %v448 = vshrl.u32 %v447, 2
      %v449 = vmul.u32 %v448, 6
      %v450 = vsub.s32 %v444, %v449
      %v451 = vsub.s32 0, %v450
      %v452 = vsel %vm442, %v451, %v450
      %vm453 = vcmp.ne.s32.totalorder %v452, 0
      %vm454 = vcmp.lt.s32.totalorder %v452, 0
      %vm455 = vmand %vm454, %vm453
      %v456 = vadd.s32 %v452, 6
      %v457 = vsel %vm455, %v456, %v452
      %vm458 = vcmp.lt.s32.totalorder %v457, 4
      %v459 = vld [vmem:[%s434] sm:$0xf]
      %v460 = vld [vmem:[%s434 + $0x4] sm:$0xf]
      %v461 = vld [vmem:[%s434 + $0x8] sm:$0xf]
      %v462 = vld [vmem:[%s434 + $0xc] sm:$0xf]
      %v467 = vunpack.c.l.b16 %v459
      %v468 = vunpack.c.l.b16 %v460
      %v469 = vunpack.c.l.b16 %v461
      %v470 = vunpack.c.l.b16 %v462
      %v471 = vpack.c.b16 %v468, %v467
      %v472 = vpack.c.b16 %v470, %v469
      %475 = vrot.lane.b32.xlu0 %v471, 127
      %v476 = vpop.permute.xlu0 %475
      %477 = vrot.lane.b32.xlu0 %v472, 127
      %v478 = vpop.permute.xlu0 %477
      %481 = vrot.lane.b32.xlu0 %v471, 126
      %v482 = vpop.permute.xlu0 %481
      %483 = vrot.lane.b32.xlu0 %v472, 126
      %v484 = vpop.permute.xlu0 %483
      %487 = vrot.lane.b32.xlu0 %v471, 122
      %v488 = vpop.permute.xlu0 %487
      %489 = vrot.lane.b32.xlu0 %v472, 122
      %v490 = vpop.permute.xlu0 %489
      %493 = vrot.lane.b32.xlu0 %v471, 121
      %v494 = vpop.permute.xlu0 %493
      %495 = vrot.lane.b32.xlu0 %v472, 121
      %v496 = vpop.permute.xlu0 %495
      %499 = vrot.lane.b32.xlu0 %v471, 120
      %v500 = vpop.permute.xlu0 %499
      %501 = vrot.lane.b32.xlu0 %v472, 120
      %v502 = vpop.permute.xlu0 %501
      %505 = vrot.lane.b32.xlu0 %v471, 116
      %v506 = vpop.permute.xlu0 %505
      %507 = vrot.lane.b32.xlu0 %v472, 116
      %v508 = vpop.permute.xlu0 %507
      %511 = vrot.lane.b32.xlu0 %v471, 115
      %v512 = vpop.permute.xlu0 %511
      %513 = vrot.lane.b32.xlu0 %v472, 115
      %v514 = vpop.permute.xlu0 %513
      %517 = vrot.lane.b32.xlu0 %v471, 114
      %v518 = vpop.permute.xlu0 %517
      %519 = vrot.lane.b32.xlu0 %v472, 114
      %v520 = vpop.permute.xlu0 %519
      %v523 = vld [vmem:[%s1] sm:$0xff]
      %v524 = vld [vmem:[%s1 + $0x8] sm:$0xf]
      %v525 = vld [vmem:[%s1 + $0xc] sm:$0xff]
      %v526 = vld [vmem:[%s1 + $0x14] sm:$0xf]
      %v527 = vld [vmem:[%s1 + $0x18] sm:$0xff]
      %v528 = vld [vmem:[%s1 + $0x20] sm:$0xf]
      %v529 = vld [vmem:[%s1 + $0x24] sm:$0xff]
      %v530 = vld [vmem:[%s1 + $0x2c] sm:$0xf]
      %v531 = vld [vmem:[%s2] sm:$0xff]
      %v532 = vld [vmem:[%s2 + $0x8] sm:$0xff]
      %v533 = vld [vmem:[%s2 + $0x10] sm:$0xff]
      %v534 = vld [vmem:[%s2 + $0x18] sm:$0xff]
      %536 = vset.pattern.permute.xlu0 0
      %537 = vperm.xlu0 %536, %v531
      %v538 = vpop.permute.xlu0 %537
      %541 = vset.pattern.permute.xlu0 0
      %542 = vperm.xlu0 %541, %v532
      %v543 = vpop.permute.xlu0 %542
      %546 = vset.pattern.permute.xlu0 0
      %547 = vperm.xlu0 %546, %v533
      %v548 = vpop.permute.xlu0 %547
      %551 = vset.pattern.permute.xlu0 0
      %552 = vperm.xlu0 %551, %v534
      %v553 = vpop.permute.xlu0 %552
      %v563 = vunpack.c.l.b16 %v523
      %v564 = vunpack.c.h.b16 %v523
      %v565 = vunpack.c.l.b16 %v524
      %v566 = vunpack.c.l.b16 %v525
      %v567 = vunpack.c.h.b16 %v525
      %v568 = vunpack.c.l.b16 %v526
      %v569 = vunpack.c.l.b16 %v527
      %v570 = vunpack.c.h.b16 %v527
      %v571 = vunpack.c.l.b16 %v528
      %v572 = vunpack.c.l.b16 %v529
      %v573 = vunpack.c.h.b16 %v529
      %v574 = vunpack.c.l.b16 %v530
      %v575 = vpack.c.b16 %v566, %v563
      %v576 = vpack.c.b16 %v567, %v564
      %v577 = vpack.c.b16 %v568, %v565
      %v578 = vpack.c.b16 %v572, %v569
      %v579 = vpack.c.b16 %v573, %v570
      %v580 = vpack.c.b16 %v574, %v571
      %vm585 = vcmask 261120
      %v587 = vsel %vm585, %v577, 0
      %v590 = vsel %vm585, %v580, 0
      %592 = vmatprep.subr.bf16.mxu0 0
      %593 = vmatpush1.bf16.msra.mxu0 %v471
      %594 = vmatprep.subr.bf16.mxu0 0
      %595 = vmatpush1.bf16.msra.mxu0 %v472
      %596 = vmatprep.subr.bf16.mxu0 0
      %597 = vmatpush1.bf16.msra.mxu0 %v476
      %598 = vmatprep.subr.bf16.mxu0 0
      %599 = vmatpush1.bf16.msra.mxu0 %v478
      %600 = vmatprep.subr.bf16.mxu0 0
      %601 = vmatpush1.bf16.msra.mxu0 %v482
      %602 = vmatprep.subr.bf16.mxu0 0
      %603 = vmatpush1.bf16.msra.mxu0 %v484
      %604 = vmatprep.subr.bf16.mxu0 0
      %605 = vmatpush1.bf16.msra.mxu0 %v488
      %606 = vmatprep.subr.bf16.mxu0 0
      %607 = vmatpush1.bf16.msra.mxu0 %v490
      %608 = vmatprep.subr.bf16.mxu0 0
      %609 = vmatpush1.bf16.msra.mxu0 %v494
      %610 = vmatprep.subr.bf16.mxu0 0
      %611 = vmatpush1.bf16.msra.mxu0 %v496
      %612 = vmatprep.subr.bf16.mxu0 0
      %613 = vmatpush1.bf16.msra.mxu0 %v500
      %614 = vmatprep.subr.bf16.mxu0 0
      %615 = vmatpush1.bf16.msra.mxu0 %v502
      %616 = vmatprep.subr.bf16.mxu0 0
      %617 = vmatpush1.bf16.msra.mxu0 %v506
      %618 = vmatprep.subr.bf16.mxu0 0
      %619 = vmatpush1.bf16.msra.mxu0 %v508
      %620 = vmatprep.subr.bf16.mxu0 0
      %621 = vmatpush1.bf16.msra.mxu0 %v512
      %622 = vmatprep.subr.bf16.mxu0 0
      %623 = vmatpush1.bf16.msra.mxu0 %v514
      %624 = vmatprep.mubr.bf16.mxu0 %v576
      %625 = vmatmul.mubr.bf16.gmra.mrb[0].mxu0 %v575
      %v626 = vpop.f32.mrb[0].mxu0
      %v627 = vadd.f32 %v538, %v626
      %v628 = vpop.f32.mrb[0].mxu0
      %v629 = vpop.f32.mrb[0].mxu0
      %v630 = vadd.f32 %v543, %v629
      %v631 = vpop.f32.mrb[0].mxu0
      %632 = vmatprep.mubr.bf16.mxu0 %v579
      %633 = vmatmul.mubr.bf16.gmra.mrb[0].mxu0 %v578
      %v634 = vpop.f32.mrb[0].mxu0
      %v635 = vadd.f32 %v548, %v634
      %v636 = vpop.f32.mrb[0].mxu0
      %v637 = vpop.f32.mrb[0].mxu0
      %v638 = vadd.f32 %v553, %v637
      %v639 = vpop.f32.mrb[0].mxu0
      %640 = vdwg.mxu0
      %641 = vmatprep.subr.bf16.mxu0 0
      %642 = vmatpush1.bf16.msra.mxu0 %v518
      %643 = vmatprep.subr.bf16.mxu0 0
      %644 = vmatpush1.bf16.msra.mxu0 %v520
      %645 = vmatprep.subr.bf16.mxu0 0
      %646 = vmatpush1.bf16.msra.mxu0 0
      %647 = vmatprep.subr.bf16.mxu0 0
      %648 = vmatpush1.bf16.msra.mxu0 0
      %649 = vmatprep.subr.bf16.mxu0 0
      %650 = vmatpush1.bf16.msra.mxu0 0
      %651 = vmatprep.subr.bf16.mxu0 0
      %652 = vmatpush1.bf16.msra.mxu0 0
      %653 = vmatprep.subr.bf16.mxu0 0
      %654 = vmatpush1.bf16.msra.mxu0 0
      %655 = vmatprep.subr.bf16.mxu0 0
      %656 = vmatpush1.bf16.msra.mxu0 0
      %657 = vmatprep.subr.bf16.mxu0 0
      %658 = vmatpush1.bf16.msra.mxu0 0
      %659 = vmatprep.subr.bf16.mxu0 0
      %660 = vmatpush1.bf16.msra.mxu0 0
      %661 = vmatprep.subr.bf16.mxu0 0
      %662 = vmatpush1.bf16.msra.mxu0 0
      %663 = vmatprep.subr.bf16.mxu0 0
      %664 = vmatpush1.bf16.msra.mxu0 0
      %665 = vmatprep.subr.bf16.mxu0 0
      %666 = vmatpush1.bf16.msra.mxu0 0
      %667 = vmatprep.subr.bf16.mxu0 0
      %668 = vmatpush1.bf16.msra.mxu0 0
      %669 = vmatprep.subr.bf16.mxu0 0
      %670 = vmatpush1.bf16.msra.mxu0 0
      %671 = vmatprep.subr.bf16.mxu0 0
      %672 = vmatpush1.bf16.msra.mxu0 0
      %673 = vmatprep.mubr.bf16.mxu0 0
      %674 = vmatmul.mubr.bf16.gmra.mrb[0].mxu0 %v587
      %v675 = vpop.f32.mrb[0].mxu0
      %v676 = vadd.f32 %v627, %v675
      %v677 = vpop.f32.mrb[0].mxu0
      %v678 = vpop.f32.mrb[0].mxu0
      %v679 = vadd.f32 %v630, %v678
      %v680 = vpop.f32.mrb[0].mxu0
      %681 = vmatprep.mubr.bf16.mxu0 0
      %682 = vmatmul.mubr.bf16.gmra.mrb[0].mxu0 %v590
      %v683 = vpop.f32.mrb[0].mxu0
      %v684 = vadd.f32 %v635, %v683
      %v685 = vpop.f32.mrb[0].mxu0
      %v686 = vpop.f32.mrb[0].mxu0
      %v687 = vadd.f32 %v638, %v686
      %v688 = vpop.f32.mrb[0].mxu0
      %689 = vdwg.mxu0
      %v690 = vsel %vm458, 1, 0
      %vm691 = vcmp.eq.s32.totalorder %v690, 1
      %v692 = vsel %vm691, %v676, 0.0
      %v693 = vsel %vm691, %v679, 0.0
      %v694 = vsel %vm691, %v684, 0.0
      %v695 = vsel %vm691, %v687, 0.0
      %vm696 = vcmask 310272
      %697 = vst.msk [vmem:[#allocation2] sm:$0xff] %vm696, 0.0
      %698 = vst.msk [vmem:[#allocation2 + $0x8] sm:$0xff] %vm696, 0.0
      %699 = vst.msk [vmem:[#allocation2 + $0x10] sm:$0xff] %vm696, 0.0
      %700 = vst.msk [vmem:[#allocation2 + $0x18] sm:$0xff] %vm696, 0.0
      %705 = vrot.lane.b32.xlu0 %v692, 7
      %v706 = vpop.permute.xlu0 %705
      %707 = vrot.lane.b32.xlu0 %v693, 7
      %v708 = vpop.permute.xlu0 %707
      %709 = vrot.lane.b32.xlu0 %v694, 7
      %v710 = vpop.permute.xlu0 %709
      %711 = vrot.lane.b32.xlu0 %v695, 7
      %v712 = vpop.permute.xlu0 %711
      %vm717 = vcmask 252984
      %718 = vst.msk [vmem:[#allocation2] sm:$0xff] %vm717, %v706
      %719 = vst.msk [vmem:[#allocation2 + $0x8] sm:$0xff] %vm717, %v708
      %720 = vst.msk [vmem:[#allocation2 + $0x10] sm:$0xff] %vm717, %v710
      %721 = vst.msk [vmem:[#allocation2 + $0x18] sm:$0xff] %vm717, %v712
      %v722 = vld [vmem:[#allocation2] sm:$0xff]
      %v723 = vld [vmem:[#allocation2 + $0x8] sm:$0xff]
      %v724 = vld [vmem:[#allocation2 + $0x10] sm:$0xff]
      %v725 = vld [vmem:[#allocation2 + $0x18] sm:$0xff]
      %v726 = vmax.f32 %v722, 0.0
      %v727 = vmax.f32 %v723, 0.0
      %v728 = vmax.f32 %v724, 0.0
      %v729 = vmax.f32 %v725, 0.0
      %v730 = vpack.c.bf16 %v727, %v726
      %v731 = vpack.c.bf16 %v729, %v728
      %734 = vrot.lane.b32.xlu0 %v730, 127
      %v735 = vpop.permute.xlu0 %734
      %736 = vrot.lane.b32.xlu0 %v731, 127
      %v737 = vpop.permute.xlu0 %736
      %740 = vrot.lane.b32.xlu0 %v730, 126
      %v741 = vpop.permute.xlu0 %740
      %742 = vrot.lane.b32.xlu0 %v731, 126
      %v743 = vpop.permute.xlu0 %742
      %746 = vrot.lane.b32.xlu0 %v730, 122
      %v747 = vpop.permute.xlu0 %746
      %748 = vrot.lane.b32.xlu0 %v731, 122
      %v749 = vpop.permute.xlu0 %748
      %752 = vrot.lane.b32.xlu0 %v730, 121
      %v753 = vpop.permute.xlu0 %752
      %754 = vrot.lane.b32.xlu0 %v731, 121
      %v755 = vpop.permute.xlu0 %754
      %758 = vrot.lane.b32.xlu0 %v730, 120
      %v759 = vpop.permute.xlu0 %758
      %760 = vrot.lane.b32.xlu0 %v731, 120
      %v761 = vpop.permute.xlu0 %760
      %764 = vrot.lane.b32.xlu0 %v730, 116
      %v765 = vpop.permute.xlu0 %764
      %766 = vrot.lane.b32.xlu0 %v731, 116
      %v767 = vpop.permute.xlu0 %766
      %770 = vrot.lane.b32.xlu0 %v730, 115
      %v771 = vpop.permute.xlu0 %770
      %772 = vrot.lane.b32.xlu0 %v731, 115
      %v773 = vpop.permute.xlu0 %772
      %776 = vrot.lane.b32.xlu0 %v730, 114
      %v777 = vpop.permute.xlu0 %776
      %778 = vrot.lane.b32.xlu0 %v731, 114
      %v779 = vpop.permute.xlu0 %778
      %v782 = vld [vmem:[%s3] sm:$0xff]
      %v783 = vld [vmem:[%s3 + $0x8] sm:$0xf]
      %v784 = vld [vmem:[%s3 + $0xc] sm:$0xff]
      %v785 = vld [vmem:[%s3 + $0x14] sm:$0xf]
      %v786 = vld [vmem:[%s4] sm:$0xff]
      %v787 = vld [vmem:[%s4 + $0x8] sm:$0xff]
      %789 = vset.pattern.permute.xlu0 0
      %790 = vperm.xlu0 %789, %v786
      %v791 = vpop.permute.xlu0 %790
      %794 = vset.pattern.permute.xlu0 0
      %795 = vperm.xlu0 %794, %v787
      %v796 = vpop.permute.xlu0 %795
      %v802 = vunpack.c.l.b16 %v782
      %v803 = vunpack.c.h.b16 %v782
      %v804 = vunpack.c.l.b16 %v783
      %v805 = vunpack.c.l.b16 %v784
      %v806 = vunpack.c.h.b16 %v784
      %v807 = vunpack.c.l.b16 %v785
      %v808 = vpack.c.b16 %v805, %v802
      %v809 = vpack.c.b16 %v806, %v803
      %v810 = vpack.c.b16 %v807, %v804
      %v814 = vsel %vm585, %v810, 0
      %816 = vmatprep.subr.bf16.mxu0 0
      %817 = vmatpush1.bf16.msra.mxu0 %v730
      %818 = vmatprep.subr.bf16.mxu0 0
      %819 = vmatpush1.bf16.msra.mxu0 %v731
      %820 = vmatprep.subr.bf16.mxu0 0
      %821 = vmatpush1.bf16.msra.mxu0 %v735
      %822 = vmatprep.subr.bf16.mxu0 0
      %823 = vmatpush1.bf16.msra.mxu0 %v737
      %824 = vmatprep.subr.bf16.mxu0 0
      %825 = vmatpush1.bf16.msra.mxu0 %v741
      %826 = vmatprep.subr.bf16.mxu0 0
      %827 = vmatpush1.bf16.msra.mxu0 %v743
      %828 = vmatprep.subr.bf16.mxu0 0
      %829 = vmatpush1.bf16.msra.mxu0 %v747
      %830 = vmatprep.subr.bf16.mxu0 0
      %831 = vmatpush1.bf16.msra.mxu0 %v749
      %832 = vmatprep.subr.bf16.mxu0 0
      %833 = vmatpush1.bf16.msra.mxu0 %v753
      %834 = vmatprep.subr.bf16.mxu0 0
      %835 = vmatpush1.bf16.msra.mxu0 %v755
      %836 = vmatprep.subr.bf16.mxu0 0
      %837 = vmatpush1.bf16.msra.mxu0 %v759
      %838 = vmatprep.subr.bf16.mxu0 0
      %839 = vmatpush1.bf16.msra.mxu0 %v761
      %840 = vmatprep.subr.bf16.mxu0 0
      %841 = vmatpush1.bf16.msra.mxu0 %v765
      %842 = vmatprep.subr.bf16.mxu0 0
      %843 = vmatpush1.bf16.msra.mxu0 %v767
      %844 = vmatprep.subr.bf16.mxu0 0
      %845 = vmatpush1.bf16.msra.mxu0 %v771
      %846 = vmatprep.subr.bf16.mxu0 0
      %847 = vmatpush1.bf16.msra.mxu0 %v773
      %848 = vmatprep.mubr.bf16.mxu0 %v809
      %849 = vmatmul.mubr.bf16.gmra.mrb[0].mxu0 %v808
      %v850 = vpop.f32.mrb[0].mxu0
      %v851 = vadd.f32 %v791, %v850
      %v852 = vpop.f32.mrb[0].mxu0
      %v853 = vpop.f32.mrb[0].mxu0
      %v854 = vadd.f32 %v796, %v853
      %v855 = vpop.f32.mrb[0].mxu0
      %856 = vdwg.mxu0
      %857 = vmatprep.subr.bf16.mxu0 0
      %858 = vmatpush1.bf16.msra.mxu0 %v777
      %859 = vmatprep.subr.bf16.mxu0 0
      %860 = vmatpush1.bf16.msra.mxu0 %v779
      %861 = vmatprep.subr.bf16.mxu0 0
      %862 = vmatpush1.bf16.msra.mxu0 0
      %863 = vmatprep.subr.bf16.mxu0 0
      %864 = vmatpush1.bf16.msra.mxu0 0
      %865 = vmatprep.subr.bf16.mxu0 0
      %866 = vmatpush1.bf16.msra.mxu0 0
      %867 = vmatprep.subr.bf16.mxu0 0
      %868 = vmatpush1.bf16.msra.mxu0 0
      %869 = vmatprep.subr.bf16.mxu0 0
      %870 = vmatpush1.bf16.msra.mxu0 0
      %871 = vmatprep.subr.bf16.mxu0 0
      %872 = vmatpush1.bf16.msra.mxu0 0
      %873 = vmatprep.subr.bf16.mxu0 0
      %874 = vmatpush1.bf16.msra.mxu0 0
      %875 = vmatprep.subr.bf16.mxu0 0
      %876 = vmatpush1.bf16.msra.mxu0 0
      %877 = vmatprep.subr.bf16.mxu0 0
      %878 = vmatpush1.bf16.msra.mxu0 0
      %879 = vmatprep.subr.bf16.mxu0 0
      %880 = vmatpush1.bf16.msra.mxu0 0
      %881 = vmatprep.subr.bf16.mxu0 0
      %882 = vmatpush1.bf16.msra.mxu0 0
      %883 = vmatprep.subr.bf16.mxu0 0
      %884 = vmatpush1.bf16.msra.mxu0 0
      %885 = vmatprep.subr.bf16.mxu0 0
      %886 = vmatpush1.bf16.msra.mxu0 0
      %887 = vmatprep.subr.bf16.mxu0 0
      %888 = vmatpush1.bf16.msra.mxu0 0
      %889 = vmatprep.mubr.bf16.mxu0 0
      %890 = vmatmul.mubr.bf16.gmra.mrb[0].mxu0 %v814
      %v891 = vpop.f32.mrb[0].mxu0
      %v892 = vadd.f32 %v851, %v891
      %v893 = vpop.f32.mrb[0].mxu0
      %v894 = vpop.f32.mrb[0].mxu0
      %v895 = vadd.f32 %v854, %v894
      %v896 = vpop.f32.mrb[0].mxu0
      %897 = vdwg.mxu0
      %v898 = vmax.f32 %v892, 0.0
      %v899 = vmax.f32 %v895, 0.0
      %v900 = vpack.c.bf16 %v899, %v898
      %v901 = vld [vmem:[%s5] sm:$0xf]
      %v902 = vld [vmem:[%s5 + $0x4] sm:$0xf]
      %v903 = vld [vmem:[%s5 + $0x8] sm:$0xf]
      %v904 = vld [vmem:[%s5 + $0xc] sm:$0xf]
      %v905 = vld [vmem:[%s6] sm:$0xff]
      %v906 = vld [vmem:[%s6 + $0x8] sm:$0xff]
      %v907 = vld [vmem:[%s6 + $0x10] sm:$0xff]
      %v908 = vld [vmem:[%s6 + $0x18] sm:$0xff]
      %910 = vset.pattern.permute.xlu0 0
      %911 = vperm.xlu0 %910, %v905
      %v912 = vpop.permute.xlu0 %911
      %915 = vset.pattern.permute.xlu0 0
      %916 = vperm.xlu0 %915, %v906
      %v917 = vpop.permute.xlu0 %916
      %920 = vset.pattern.permute.xlu0 0
      %921 = vperm.xlu0 %920, %v907
      %v922 = vpop.permute.xlu0 %921
      %925 = vset.pattern.permute.xlu0 0
      %926 = vperm.xlu0 %925, %v908
      %v927 = vpop.permute.xlu0 %926
      %v933 = vunpack.c.l.b16 %v901
      %v934 = vunpack.c.l.b16 %v902
      %v935 = vunpack.c.l.b16 %v903
      %v936 = vunpack.c.l.b16 %v904
      %v937 = vpack.c.b16 %v934, %v933
      %v938 = vpack.c.b16 %v936, %v935
      %vm939 = vcmask 130048
      %v941 = vsel %vm939, %v937, 0
      %v944 = vsel %vm939, %v938, 0
      %946 = vmatprep.subr.bf16.mxu0 0
      %947 = vmatpush1.bf16.msra.mxu0 %v900
      %948 = vmatprep.subr.bf16.mxu0 0
      %949 = vmatpush1.bf16.msra.mxu0 0
      %950 = vmatprep.subr.bf16.mxu0 0
      %951 = vmatpush1.bf16.msra.mxu0 0
      %952 = vmatprep.subr.bf16.mxu0 0
      %953 = vmatpush1.bf16.msra.mxu0 0
      %954 = vmatprep.subr.bf16.mxu0 0
      %955 = vmatpush1.bf16.msra.mxu0 0
      %956 = vmatprep.subr.bf16.mxu0 0
      %957 = vmatpush1.bf16.msra.mxu0 0
      %958 = vmatprep.subr.bf16.mxu0 0
      %959 = vmatpush1.bf16.msra.mxu0 0
      %960 = vmatprep.subr.bf16.mxu0 0
      %961 = vmatpush1.bf16.msra.mxu0 0
      %962 = vmatprep.subr.bf16.mxu0 0
      %963 = vmatpush1.bf16.msra.mxu0 0
      %964 = vmatprep.subr.bf16.mxu0 0
      %965 = vmatpush1.bf16.msra.mxu0 0
      %966 = vmatprep.subr.bf16.mxu0 0
      %967 = vmatpush1.bf16.msra.mxu0 0
      %968 = vmatprep.subr.bf16.mxu0 0
      %969 = vmatpush1.bf16.msra.mxu0 0
      %970 = vmatprep.subr.bf16.mxu0 0
      %971 = vmatpush1.bf16.msra.mxu0 0
      %972 = vmatprep.subr.bf16.mxu0 0
      %973 = vmatpush1.bf16.msra.mxu0 0
      %974 = vmatprep.subr.bf16.mxu0 0
      %975 = vmatpush1.bf16.msra.mxu0 0
      %976 = vmatprep.subr.bf16.mxu0 0
      %977 = vmatpush1.bf16.msra.mxu0 0
      %978 = vmatprep.mubr.bf16.mxu0 0
      %979 = vmatmul.mubr.bf16.gmra.mrb[0].mxu0 %v941
      %v980 = vpop.f32.mrb[0].mxu0
      %v981 = vadd.f32 %v912, %v980
      %v982 = vpop.f32.mrb[0].mxu0
      %v983 = vpop.f32.mrb[0].mxu0
      %v984 = vadd.f32 %v917, %v983
      %v985 = vpop.f32.mrb[0].mxu0
      %986 = vmatprep.mubr.bf16.mxu0 0
      %987 = vmatmul.mubr.bf16.gmra.mrb[0].mxu0 %v944
      %v988 = vpop.f32.mrb[0].mxu0
      %v989 = vadd.f32 %v922, %v988
      %v990 = vpop.f32.mrb[0].mxu0
      %v991 = vpop.f32.mrb[0].mxu0
      %v992 = vadd.f32 %v927, %v991
      %v993 = vpop.f32.mrb[0].mxu0
      %994 = vdwg.mxu0
      %999 = vrot.lane.b32.xlu0 %v722, 121
      %v1000 = vpop.permute.xlu0 %999
      %1001 = vrot.lane.b32.xlu0 %v723, 121
      %v1002 = vpop.permute.xlu0 %1001
      %1003 = vrot.lane.b32.xlu0 %v724, 121
      %v1004 = vpop.permute.xlu0 %1003
      %1005 = vrot.lane.b32.xlu0 %v725, 121
      %v1006 = vpop.permute.xlu0 %1005
      %v1011 = vadd.f32 %v981, %v1000
      %v1012 = vadd.f32 %v984, %v1002
      %v1013 = vadd.f32 %v989, %v1004
      %v1014 = vadd.f32 %v992, %v1006
      %v1015 = vsel %vm691, %v1011, 0.0
      %v1016 = vsel %vm691, %v1012, 0.0
      %v1017 = vsel %vm691, %v1013, 0.0
      %v1018 = vsel %vm691, %v1014, 0.0
      %1023 = vrot.lane.b32.xlu0 %v1015, 7
      %v1024 = vpop.permute.xlu0 %1023
      %1025 = vrot.lane.b32.xlu0 %v1016, 7
      %v1026 = vpop.permute.xlu0 %1025
      %1027 = vrot.lane.b32.xlu0 %v1017, 7
      %v1028 = vpop.permute.xlu0 %1027
      %1029 = vrot.lane.b32.xlu0 %v1018, 7
      %v1030 = vpop.permute.xlu0 %1029
      %1035 = vst.msk [vmem:[#allocation2] sm:$0xff] %vm717, %v1024
      %1036 = vst.msk [vmem:[#allocation2 + $0x8] sm:$0xff] %vm717, %v1026
      %1037 = vst.msk [vmem:[#allocation2 + $0x10] sm:$0xff] %vm717, %v1028
      %1038 = vst.msk [vmem:[#allocation2 + $0x18] sm:$0xff] %vm717, %v1030
      %v1039 = vld [vmem:[#allocation2] sm:$0xff]
      %v1040 = vld [vmem:[#allocation2 + $0x8] sm:$0xff]
      %v1041 = vld [vmem:[#allocation2 + $0x10] sm:$0xff]
      %v1042 = vld [vmem:[#allocation2 + $0x18] sm:$0xff]
      %v1043 = vmax.f32 %v1039, 0.0
      %v1044 = vmax.f32 %v1040, 0.0
      %v1045 = vmax.f32 %v1041, 0.0
      %v1046 = vmax.f32 %v1042, 0.0
      %v1047 = vpack.c.bf16 %v1044, %v1043
      %v1048 = vpack.c.bf16 %v1046, %v1045
      %1051 = vrot.lane.b32.xlu0 %v1047, 127
      %v1052 = vpop.permute.xlu0 %1051
      %1053 = vrot.lane.b32.xlu0 %v1048, 127
      %v1054 = vpop.permute.xlu0 %1053
      %1057 = vrot.lane.b32.xlu0 %v1047, 126
      %v1058 = vpop.permute.xlu0 %1057
      %1059 = vrot.lane.b32.xlu0 %v1048, 126
      %v1060 = vpop.permute.xlu0 %1059
      %1063 = vrot.lane.b32.xlu0 %v1047, 122
      %v1064 = vpop.permute.xlu0 %1063
      %1065 = vrot.lane.b32.xlu0 %v1048, 122
      %v1066 = vpop.permute.xlu0 %1065
      %1069 = vrot.lane.b32.xlu0 %v1047, 121
      %v1070 = vpop.permute.xlu0 %1069
      %1071 = vrot.lane.b32.xlu0 %v1048, 121
      %v1072 = vpop.permute.xlu0 %1071
      %1075 = vrot.lane.b32.xlu0 %v1047, 120
      %v1076 = vpop.permute.xlu0 %1075
      %1077 = vrot.lane.b32.xlu0 %v1048, 120
      %v1078 = vpop.permute.xlu0 %1077
      %1081 = vrot.lane.b32.xlu0 %v1047, 116
      %v1082 = vpop.permute.xlu0 %1081
      %1083 = vrot.lane.b32.xlu0 %v1048, 116
      %v1084 = vpop.permute.xlu0 %1083
      %1087 = vrot.lane.b32.xlu0 %v1047, 115
      %v1088 = vpop.permute.xlu0 %1087
      %1089 = vrot.lane.b32.xlu0 %v1048, 115
      %v1090 = vpop.permute.xlu0 %1089
      %1093 = vrot.lane.b32.xlu0 %v1047, 114
      %v1094 = vpop.permute.xlu0 %1093
      %1095 = vrot.lane.b32.xlu0 %v1048, 114
      %v1096 = vpop.permute.xlu0 %1095
      %v1099 = vld [vmem:[%s7] sm:$0xff]
      %v1100 = vld [vmem:[%s7 + $0x8] sm:$0xf]
      %v1101 = vld [vmem:[%s7 + $0xc] sm:$0xff]
      %v1102 = vld [vmem:[%s7 + $0x14] sm:$0xf]
      %v1103 = vld [vmem:[%s8] sm:$0xff]
      %v1104 = vld [vmem:[%s8 + $0x8] sm:$0xff]
      %1106 = vset.pattern.permute.xlu0 0
      %1107 = vperm.xlu0 %1106, %v1103
      %v1108 = vpop.permute.xlu0 %1107
      %1111 = vset.pattern.permute.xlu0 0
      %1112 = vperm.xlu0 %1111, %v1104
      %v1113 = vpop.permute.xlu0 %1112
      %v1119 = vunpack.c.l.b16 %v1099
      %v1120 = vunpack.c.h.b16 %v1099
      %v1121 = vunpack.c.l.b16 %v1100
      %v1122 = vunpack.c.l.b16 %v1101
      %v1123 = vunpack.c.h.b16 %v1101
      %v1124 = vunpack.c.l.b16 %v1102
      %v1125 = vpack.c.b16 %v1122, %v1119
      %v1126 = vpack.c.b16 %v1123, %v1120
      %v1127 = vpack.c.b16 %v1124, %v1121
      %v1131 = vsel %vm585, %v1127, 0
      %1133 = vmatprep.subr.bf16.mxu0 0
      %1134 = vmatpush1.bf16.msra.mxu0 %v1047
      %1135 = vmatprep.subr.bf16.mxu0 0
      %1136 = vmatpush1.bf16.msra.mxu0 %v1048
      %1137 = vmatprep.subr.bf16.mxu0 0
      %1138 = vmatpush1.bf16.msra.mxu0 %v1052
      %1139 = vmatprep.subr.bf16.mxu0 0
      %1140 = vmatpush1.bf16.msra.mxu0 %v1054
      %1141 = vmatprep.subr.bf16.mxu0 0
      %1142 = vmatpush1.bf16.msra.mxu0 %v1058
      %1143 = vmatprep.subr.bf16.mxu0 0
      %1144 = vmatpush1.bf16.msra.mxu0 %v1060
      %1145 = vmatprep.subr.bf16.mxu0 0
      %1146 = vmatpush1.bf16.msra.mxu0 %v1064
      %1147 = vmatprep.subr.bf16.mxu0 0
      %1148 = vmatpush1.bf16.msra.mxu0 %v1066
      %1149 = vmatprep.subr.bf16.mxu0 0
      %1150 = vmatpush1.bf16.msra.mxu0 %v1070
      %1151 = vmatprep.subr.bf16.mxu0 0
      %1152 = vmatpush1.bf16.msra.mxu0 %v1072
      %1153 = vmatprep.subr.bf16.mxu0 0
      %1154 = vmatpush1.bf16.msra.mxu0 %v1076
      %1155 = vmatprep.subr.bf16.mxu0 0
      %1156 = vmatpush1.bf16.msra.mxu0 %v1078
      %1157 = vmatprep.subr.bf16.mxu0 0
      %1158 = vmatpush1.bf16.msra.mxu0 %v1082
      %1159 = vmatprep.subr.bf16.mxu0 0
      %1160 = vmatpush1.bf16.msra.mxu0 %v1084
      %1161 = vmatprep.subr.bf16.mxu0 0
      %1162 = vmatpush1.bf16.msra.mxu0 %v1088
      %1163 = vmatprep.subr.bf16.mxu0 0
      %1164 = vmatpush1.bf16.msra.mxu0 %v1090
      %1165 = vmatprep.mubr.bf16.mxu0 %v1126
      %1166 = vmatmul.mubr.bf16.gmra.mrb[0].mxu0 %v1125
      %v1167 = vpop.f32.mrb[0].mxu0
      %v1168 = vadd.f32 %v1108, %v1167
      %v1169 = vpop.f32.mrb[0].mxu0
      %v1170 = vpop.f32.mrb[0].mxu0
      %v1171 = vadd.f32 %v1113, %v1170
      %v1172 = vpop.f32.mrb[0].mxu0
      %1173 = vdwg.mxu0
      %1174 = vmatprep.subr.bf16.mxu0 0
      %1175 = vmatpush1.bf16.msra.mxu0 %v1094
      %1176 = vmatprep.subr.bf16.mxu0 0
      %1177 = vmatpush1.bf16.msra.mxu0 %v1096
      %1178 = vmatprep.subr.bf16.mxu0 0
      %1179 = vmatpush1.bf16.msra.mxu0 0
      %1180 = vmatprep.subr.bf16.mxu0 0
      %1181 = vmatpush1.bf16.msra.mxu0 0
      %1182 = vmatprep.subr.bf16.mxu0 0
      %1183 = vmatpush1.bf16.msra.mxu0 0
      %1184 = vmatprep.subr.bf16.mxu0 0
      %1185 = vmatpush1.bf16.msra.mxu0 0
      %1186 = vmatprep.subr.bf16.mxu0 0
      %1187 = vmatpush1.bf16.msra.mxu0 0
      %1188 = vmatprep.subr.bf16.mxu0 0
      %1189 = vmatpush1.bf16.msra.mxu0 0
      %1190 = vmatprep.subr.bf16.mxu0 0
      %1191 = vmatpush1.bf16.msra.mxu0 0
      %1192 = vmatprep.subr.bf16.mxu0 0
      %1193 = vmatpush1.bf16.msra.mxu0 0
      %1194 = vmatprep.subr.bf16.mxu0 0
      %1195 = vmatpush1.bf16.msra.mxu0 0
      %1196 = vmatprep.subr.bf16.mxu0 0
      %1197 = vmatpush1.bf16.msra.mxu0 0
      %1198 = vmatprep.subr.bf16.mxu0 0
      %1199 = vmatpush1.bf16.msra.mxu0 0
      %1200 = vmatprep.subr.bf16.mxu0 0
      %1201 = vmatpush1.bf16.msra.mxu0 0
      %1202 = vmatprep.subr.bf16.mxu0 0
      %1203 = vmatpush1.bf16.msra.mxu0 0
      %1204 = vmatprep.subr.bf16.mxu0 0
      %1205 = vmatpush1.bf16.msra.mxu0 0
      %1206 = vmatprep.mubr.bf16.mxu0 0
      %1207 = vmatmul.mubr.bf16.gmra.mrb[0].mxu0 %v1131
      %v1208 = vpop.f32.mrb[0].mxu0
      %v1209 = vadd.f32 %v1168, %v1208
      %v1210 = vpop.f32.mrb[0].mxu0
      %v1211 = vpop.f32.mrb[0].mxu0
      %v1212 = vadd.f32 %v1171, %v1211
      %v1213 = vpop.f32.mrb[0].mxu0
      %1214 = vdwg.mxu0
      %v1215 = vmax.f32 %v1209, 0.0
      %v1216 = vmax.f32 %v1212, 0.0
      %v1217 = vpack.c.bf16 %v1216, %v1215
      %v1218 = vld [vmem:[%s9] sm:$0xf]
      %v1219 = vld [vmem:[%s9 + $0x4] sm:$0xf]
      %v1220 = vld [vmem:[%s9 + $0x8] sm:$0xf]
      %v1221 = vld [vmem:[%s9 + $0xc] sm:$0xf]
      %v1222 = vld [vmem:[%s10] sm:$0xff]
      %v1223 = vld [vmem:[%s10 + $0x8] sm:$0xff]
      %v1224 = vld [vmem:[%s10 + $0x10] sm:$0xff]
      %v1225 = vld [vmem:[%s10 + $0x18] sm:$0xff]
      %1227 = vset.pattern.permute.xlu0 0
      %1228 = vperm.xlu0 %1227, %v1222
      %v1229 = vpop.permute.xlu0 %1228
      %1232 = vset.pattern.permute.xlu0 0
      %1233 = vperm.xlu0 %1232, %v1223
      %v1234 = vpop.permute.xlu0 %1233
      %1237 = vset.pattern.permute.xlu0 0
      %1238 = vperm.xlu0 %1237, %v1224
      %v1239 = vpop.permute.xlu0 %1238
      %1242 = vset.pattern.permute.xlu0 0
      %1243 = vperm.xlu0 %1242, %v1225
      %v1244 = vpop.permute.xlu0 %1243
      %v1250 = vunpack.c.l.b16 %v1218
      %v1251 = vunpack.c.l.b16 %v1219
      %v1252 = vunpack.c.l.b16 %v1220
      %v1253 = vunpack.c.l.b16 %v1221
      %v1254 = vpack.c.b16 %v1251, %v1250
      %v1255 = vpack.c.b16 %v1253, %v1252
      %v1257 = vsel %vm939, %v1254, 0
      %v1260 = vsel %vm939, %v1255, 0
      %1262 = vmatprep.subr.bf16.mxu0 0
      %1263 = vmatpush1.bf16.msra.mxu0 %v1217
      %1264 = vmatprep.subr.bf16.mxu0 0
      %1265 = vmatpush1.bf16.msra.mxu0 0
      %1266 = vmatprep.subr.bf16.mxu0 0
      %1267 = vmatpush1.bf16.msra.mxu0 0
      %1268 = vmatprep.subr.bf16.mxu0 0
      %1269 = vmatpush1.bf16.msra.mxu0 0
      %1270 = vmatprep.subr.bf16.mxu0 0
      %1271 = vmatpush1.bf16.msra.mxu0 0
      %1272 = vmatprep.subr.bf16.mxu0 0
      %1273 = vmatpush1.bf16.msra.mxu0 0
      %1274 = vmatprep.subr.bf16.mxu0 0
      %1275 = vmatpush1.bf16.msra.mxu0 0
      %1276 = vmatprep.subr.bf16.mxu0 0
      %1277 = vmatpush1.bf16.msra.mxu0 0
      %1278 = vmatprep.subr.bf16.mxu0 0
      %1279 = vmatpush1.bf16.msra.mxu0 0
      %1280 = vmatprep.subr.bf16.mxu0 0
      %1281 = vmatpush1.bf16.msra.mxu0 0
      %1282 = vmatprep.subr.bf16.mxu0 0
      %1283 = vmatpush1.bf16.msra.mxu0 0
      %1284 = vmatprep.subr.bf16.mxu0 0
      %1285 = vmatpush1.bf16.msra.mxu0 0
      %1286 = vmatprep.subr.bf16.mxu0 0
      %1287 = vmatpush1.bf16.msra.mxu0 0
      %1288 = vmatprep.subr.bf16.mxu0 0
      %1289 = vmatpush1.bf16.msra.mxu0 0
      %1290 = vmatprep.subr.bf16.mxu0 0
      %1291 = vmatpush1.bf16.msra.mxu0 0
      %1292 = vmatprep.subr.bf16.mxu0 0
      %1293 = vmatpush1.bf16.msra.mxu0 0
      %1294 = vmatprep.mubr.bf16.mxu0 0
      %1295 = vmatmul.mubr.bf16.gmra.mrb[0].mxu0 %v1257
      %v1296 = vpop.f32.mrb[0].mxu0
      %v1297 = vadd.f32 %v1229, %v1296
      %v1298 = vpop.f32.mrb[0].mxu0
      %v1299 = vpop.f32.mrb[0].mxu0
      %v1300 = vadd.f32 %v1234, %v1299
      %v1301 = vpop.f32.mrb[0].mxu0
      %1302 = vmatprep.mubr.bf16.mxu0 0
      %1303 = vmatmul.mubr.bf16.gmra.mrb[0].mxu0 %v1260
      %v1304 = vpop.f32.mrb[0].mxu0
      %v1305 = vadd.f32 %v1239, %v1304
      %v1306 = vpop.f32.mrb[0].mxu0
      %v1307 = vpop.f32.mrb[0].mxu0
      %v1308 = vadd.f32 %v1244, %v1307
      %v1309 = vpop.f32.mrb[0].mxu0
      %1310 = vdwg.mxu0
      %1315 = vrot.lane.b32.xlu0 %v1039, 121
      %v1316 = vpop.permute.xlu0 %1315
      %1317 = vrot.lane.b32.xlu0 %v1040, 121
      %v1318 = vpop.permute.xlu0 %1317
      %1319 = vrot.lane.b32.xlu0 %v1041, 121
      %v1320 = vpop.permute.xlu0 %1319
      %1321 = vrot.lane.b32.xlu0 %v1042, 121
      %v1322 = vpop.permute.xlu0 %1321
      %v1327 = vadd.f32 %v1297, %v1316
      %v1328 = vadd.f32 %v1300, %v1318
      %v1329 = vadd.f32 %v1305, %v1320
      %v1330 = vadd.f32 %v1308, %v1322
      %v1331 = vsel %vm691, %v1327, 0.0
      %v1332 = vsel %vm691, %v1328, 0.0
      %v1333 = vsel %vm691, %v1329, 0.0
      %v1334 = vsel %vm691, %v1330, 0.0
      %1339 = vrot.lane.b32.xlu0 %v1331, 7
      %v1340 = vpop.permute.xlu0 %1339
      %1341 = vrot.lane.b32.xlu0 %v1332, 7
      %v1342 = vpop.permute.xlu0 %1341
      %1343 = vrot.lane.b32.xlu0 %v1333, 7
      %v1344 = vpop.permute.xlu0 %1343
      %1345 = vrot.lane.b32.xlu0 %v1334, 7
      %v1346 = vpop.permute.xlu0 %1345
      %1351 = vst.msk [vmem:[#allocation2] sm:$0xff] %vm717, %v1340
      %1352 = vst.msk [vmem:[#allocation2 + $0x8] sm:$0xff] %vm717, %v1342
      %1353 = vst.msk [vmem:[#allocation2 + $0x10] sm:$0xff] %vm717, %v1344
      %1354 = vst.msk [vmem:[#allocation2 + $0x18] sm:$0xff] %vm717, %v1346
      %v1355 = vld [vmem:[#allocation2] sm:$0xff]
      %v1356 = vld [vmem:[#allocation2 + $0x8] sm:$0xff]
      %v1357 = vld [vmem:[#allocation2 + $0x10] sm:$0xff]
      %v1358 = vld [vmem:[#allocation2 + $0x18] sm:$0xff]
      %v1359 = vmax.f32 %v1355, 0.0
      %v1360 = vmax.f32 %v1356, 0.0
      %v1361 = vmax.f32 %v1357, 0.0
      %v1362 = vmax.f32 %v1358, 0.0
      %v1363 = vpack.c.bf16 %v1360, %v1359
      %v1364 = vpack.c.bf16 %v1362, %v1361
      %v1365 = vld [vmem:[%s11] sm:$0xf]
      %v1366 = vld [vmem:[%s12] sm:$0xff]
      %1368 = vset.pattern.permute.xlu0 0
      %1369 = vperm.xlu0 %1368, %v1366
      %v1370 = vpop.permute.xlu0 %1369
      %1374 = vrot.lane.b32.xlu0 %v1363, 121
      %v1375 = vpop.permute.xlu0 %1374
      %1376 = vrot.lane.b32.xlu0 %v1364, 121
      %v1377 = vpop.permute.xlu0 %1376
      %v1381 = vsel %vm585, %v1365, 0
      %1383 = vmatprep.subr.bf16.mxu0 0
      %1384 = vmatpush1.bf16.msra.mxu0 %v1375
      %1385 = vmatprep.subr.bf16.mxu0 0
      %1386 = vmatpush1.bf16.msra.mxu0 %v1377
      %1387 = vmatprep.subr.bf16.mxu0 0
      %1388 = vmatpush1.bf16.msra.mxu0 0
      %1389 = vmatprep.subr.bf16.mxu0 0
      %1390 = vmatpush1.bf16.msra.mxu0 0
      %1391 = vmatprep.subr.bf16.mxu0 0
      %1392 = vmatpush1.bf16.msra.mxu0 0
      %1393 = vmatprep.subr.bf16.mxu0 0
      %1394 = vmatpush1.bf16.msra.mxu0 0
      %1395 = vmatprep.subr.bf16.mxu0 0
      %1396 = vmatpush1.bf16.msra.mxu0 0
      %1397 = vmatprep.subr.bf16.mxu0 0
      %1398 = vmatpush1.bf16.msra.mxu0 0
      %1399 = vmatprep.subr.bf16.mxu0 0
      %1400 = vmatpush1.bf16.msra.mxu0 0
      %1401 = vmatprep.subr.bf16.mxu0 0
      %1402 = vmatpush1.bf16.msra.mxu0 0
      %1403 = vmatprep.subr.bf16.mxu0 0
      %1404 = vmatpush1.bf16.msra.mxu0 0
      %1405 = vmatprep.subr.bf16.mxu0 0
      %1406 = vmatpush1.bf16.msra.mxu0 0
      %1407 = vmatprep.subr.bf16.mxu0 0
      %1408 = vmatpush1.bf16.msra.mxu0 0
      %1409 = vmatprep.subr.bf16.mxu0 0
      %1410 = vmatpush1.bf16.msra.mxu0 0
      %1411 = vmatprep.subr.bf16.mxu0 0
      %1412 = vmatpush1.bf16.msra.mxu0 0
      %1413 = vmatprep.subr.bf16.mxu0 0
      %1414 = vmatpush1.bf16.msra.mxu0 0
      %1415 = vmatprep.mubr.bf16.mxu0 0
      %1416 = vmatmul.mubr.bf16.gmra.mrb[0].mxu0 %v1381
      %v1417 = vpop.f32.mrb[0].mxu0
      %v1418 = vadd.f32 %v1370, %v1417
      %v1419 = vpop.f32.mrb[0].mxu0
      %v1420 = vpop.f32.mrb[0].mxu0
      %v1421 = vpop.f32.mrb[0].mxu0
      %1422 = vdwg.mxu0
      %vm1423 = vcmask 195584
      %1424 = vst.msk [vmem:[%s438] sm:$0xff] %vm1423, %v1418
      %p1425 = scmp.lt.s32.totalorder %s24, 1
      %s1426 = scalar_select %p1425, %s24, 1
      %s1427 = smul.addr %s1426, 8
      %s1428 = scalar_lea.vmem %s13, %s1427
      // Predicated region
      $region73: #{encoder_forward.5} parent=71 // pred_check
        %p1429 = pneg %p320
      $region74: #{encoder_forward.5} parent=71 // pred_check_branch
        %1431 = sbr.rel (%p1429) target = $region76
      $region75: #{encoder_forward.5} parent=71 // pred_region
        _
      $region76: #{encoder_forward.5} parent=71 // pred_fallthru
        _
    $region72: #{encoder_forward.5} parent=5 // pred_fallthru
      _
    %p1432 = scmp.le.s32.totalorder 2, %s19
    // Predicated region
    $region77: #{encoder_forward.5} parent=5 // pred_check
      %p1433 = pneg %p1432
    $region78: #{encoder_forward.5} parent=5 // pred_check_branch
      %1435 = sbr.rel (%p1433) target = $region80
    $region79: #{encoder_forward.5} parent=5 // pred_region
      %s1436 = ssub.s32 %s19, 2
      // Predicated region
      $region81: #{encoder_forward.5} parent=79 // pred_check
        %p1437 = pneg %p326
      $region82: #{encoder_forward.5} parent=79 // pred_check_branch
        %1439 = sbr.rel (%p1437) target = $region84
      $region83: #{encoder_forward.5} parent=79 // pred_region
        %p1440 = scmp.lt.s32.totalorder %s25, 1
        %s1441 = scalar_select %p1440, %s25, 1
        %s1442 = smul.addr %s1441, 8
        %s1443 = scalar_lea.vmem %s13, %s1442
      $region84: #{encoder_forward.5} parent=79 // pred_fallthru
        _
    $region80: #{encoder_forward.5} parent=5 // pred_fallthru
      _
  $region6: #{encoder_forward.5} parent=0 // loop_footer
    %s23 = sadd.s32 1, %s19
  $region7: #{encoder_forward.5} parent=0 // loop_footer_branch
    %18 = sbr.rel target = $region3
  $region8: #{encoder_forward.5} parent=0 // loop_exit
    _

</llo_original>
